<compile_context>
chip_gen: v5e
topology: v5e:2x2
jax: 0.10.0
libtpu: 0.0.40
codegen_flags: <defaults>
</compile_context>

<pallas_src>
import math
from functools import partial

import jax
import jax.numpy as jnp
from jax.experimental import pallas as pl
from jax.experimental.pallas import tpu as pltpu

EPS = 1e-5                      # torch.nn.LayerNorm default
VMEM_LIMIT = 64 * 1024 * 1024   # explicit VMEM budget (fits v7x's 64 MiB per-TC)


def _round_up(x, m):
    return (x + m - 1) // m * m


def _choose_col_tile(n):
    """Tile the output (lane) dim in multiples of 128 when it is large."""
    if n <= 512 or n % 128 != 0:
        return n
    for t in (512, 256, 128):
        if n % t == 0:
            return t
    return n


# ----------------------------- Pallas kernels ------------------------------- #

def _fused_linear_kernel(*refs, do_ln, has_bias, has_res, relu):
    """y = [LayerNorm(x)] @ W (+ b) (+ReLU) (+ residual).  Stats in f32, matmul bf16."""
    it = iter(refs)
    x = next(it)[...].astype(jnp.float32)            # (TM, K)
    if do_ln:
        g = next(it)[...]                            # (1, K)
        beta = next(it)[...]                         # (1, K)
        mu = jnp.mean(x, axis=-1, keepdims=True)
        d = x - mu
        var = jnp.mean(d * d, axis=-1, keepdims=True)
        x = d * jax.lax.rsqrt(var + EPS) * g + beta
    w = next(it)[...]                                # (K, TN) bf16
    y = jnp.dot(x.astype(w.dtype), w, preferred_element_type=jnp.float32)
    if has_bias:
        y = y + next(it)[...]                        # (1, TN)
    if relu:
        y = jnp.maximum(y, 0.0)
    if has_res:
        y = y + next(it)[...]                        # (TM, TN)
    o_ref = next(it)
    o_ref[...] = y.astype(o_ref.dtype)


def fused_linear(x2d, w, b=None, *, gamma=None, beta=None, residual=None, relu=False):
    """x2d: (M, K) f32; w: (K, N) bf16; b: (N,)|None; residual: (M, N)|None -> (M, N) f32."""
    M, K = x2d.shape
    N = w.shape[1]

    TM = min(512, _round_up(M, 8))
    Mp = _round_up(M, TM)
    if Mp != M:
        x2d = jnp.pad(x2d, ((0, Mp - M), (0, 0)))
        if residual is not None:
            residual = jnp.pad(residual, ((0, Mp - M), (0, 0)))
    TN = _choose_col_tile(N)
    grid = (Mp // TM, N // TN)

    inputs = [x2d]
    in_specs = [pl.BlockSpec((TM, K), lambda i, j: (i, 0))]
    if gamma is not None:
        inputs += [gamma.reshape(1, K), beta.reshape(1, K)]
        in_specs += [pl.BlockSpec((1, K), lambda i, j: (0, 0)),
                     pl.BlockSpec((1, K), lambda i, j: (0, 0))]
    inputs.append(w)
    in_specs.append(pl.BlockSpec((K, TN), lambda i, j: (0, j)))
    if b is not None:
        inputs.append(b.reshape(1, N))
        in_specs.append(pl.BlockSpec((1, TN), lambda i, j: (0, j)))
    if residual is not None:
        inputs.append(residual)
        in_specs.append(pl.BlockSpec((TM, TN), lambda i, j: (i, j)))

    out = pl.pallas_call(
        partial(_fused_linear_kernel, do_ln=gamma is not None,
                has_bias=b is not None, has_res=residual is not None, relu=relu),
        out_shape=jax.ShapeDtypeStruct((Mp, N), jnp.float32),
        grid=grid,
        in_specs=in_specs,
        out_specs=pl.BlockSpec((TM, TN), lambda i, j: (i, j)),
        compiler_params=pltpu.CompilerParams(
            dimension_semantics=("parallel", "parallel"),
            vmem_limit_bytes=VMEM_LIMIT),
    )(*inputs)
    return out[:M] if Mp != M else out


def _attn_kernel(*refs, has_mask):
    # q: (BHT, Tq, D), k/v: (BHT, Tk, D), [mask: (Tq, Tk) additive], o: (BHT, Tq, D)
    if has_mask:
        q_ref, k_ref, v_ref, m_ref, o_ref = refs
    else:
        q_ref, k_ref, v_ref, o_ref = refs
    q = q_ref[...].astype(jnp.bfloat16)
    k = k_ref[...].astype(jnp.bfloat16)
    v = v_ref[...].astype(jnp.bfloat16)
    s = jnp.einsum('bqd,bkd->bqk', q, k, preferred_element_type=jnp.float32)
    if has_mask:
        s = s + m_ref[...][None, :, :]
    s = s - jnp.max(s, axis=-1, keepdims=True)
    p = jnp.exp(s)
    p = p * pl.reciprocal(jnp.sum(p, axis=-1, keepdims=True), approx=True)
    o = jnp.einsum('bqk,bkd->bqd', p.astype(jnp.bfloat16), v,
                   preferred_element_type=jnp.float32)
    o_ref[...] = o.astype(o_ref.dtype)


def attention(q, k, v, mask=None):
    """q: (BH, Tq, D), k/v: (BH, Tk, D), mask: (Tq, Tk) additive or None -> (BH, Tq, D)."""
    BH, Tq, D = q.shape
    Tk = k.shape[1]
    # Batch many heads per grid step so per-step overhead / MXU underfill amortizes.
    if BH > 32:
        BHT = BH
        for t in (32, 16, 8):
            if BH % t == 0:
                BHT = t
                break
    else:
        BHT = BH
    grid = (BH // BHT,)

    inputs = [q, k, v]
    in_specs = [
        pl.BlockSpec((BHT, Tq, D), lambda i: (i, 0, 0)),
        pl.BlockSpec((BHT, Tk, D), lambda i: (i, 0, 0)),
        pl.BlockSpec((BHT, Tk, D), lambda i: (i, 0, 0)),
    ]
    if mask is not None:
        inputs.append(mask)
        in_specs.append(pl.BlockSpec((Tq, Tk), lambda i: (0, 0)))

    # TODO(synk): flash-style Tk tiling (online softmax) for long contexts; full-K/V
    # blocks are kept VMEM-resident here, which is fine at these sequence lengths.
    return pl.pallas_call(
        partial(_attn_kernel, has_mask=mask is not None),
        out_shape=jax.ShapeDtypeStruct((BH, Tq, D), jnp.float32),
        grid=grid,
        in_specs=in_specs,
        out_specs=pl.BlockSpec((BHT, Tq, D), lambda i: (i, 0, 0)),
        compiler_params=pltpu.CompilerParams(
            dimension_semantics=("parallel",),
            vmem_limit_bytes=VMEM_LIMIT),
    )(*inputs)


# ------------------------------ model glue ---------------------------------- #

def self_attention_block(x, lp, num_heads, mask):
    """Pre-LN self attention + residual.  x: (T, B, C)."""
    T, B, C = x.shape
    H, hd = num_heads, C // num_heads
    x2 = x.reshape(T * B, C)
    sa = lp["self_attn"]
    # fused LayerNorm + joint QKV projection (q weights pre-scaled by hd**-0.5)
    qkv = fused_linear(x2, sa["qkv_w"], sa["qkv_b"],
                       gamma=lp["sa_ln_g"], beta=lp["sa_ln_b"])          # (T*B, 3C)
    qkv = qkv.reshape(T, B, 3, H, hd).transpose(2, 1, 3, 0, 4).reshape(3, B * H, T, hd)
    o = attention(qkv[0], qkv[1], qkv[2], mask)                          # (B*H, T, hd)
    o = o.reshape(B, H, T, hd).transpose(2, 0, 1, 3).reshape(T * B, C)
    out = fused_linear(o, sa["out_w"], sa["out_b"], residual=x2)         # out-proj + residual
    return out.reshape(T, B, C)


def encoder_kv(enc, ap, num_heads, C):
    """Per-layer K/V projection of the encoder output.  enc: (Tsrc, B, Cenc)."""
    Tsrc, B, Cenc = enc.shape
    H, hd = num_heads, C // num_heads
    kv = fused_linear(enc.reshape(Tsrc * B, Cenc), ap["kv_w"], ap["kv_b"])  # (Tsrc*B, 2C)
    kv = kv.reshape(Tsrc, B, 2, H, hd).transpose(2, 1, 3, 0, 4).reshape(2, B * H, Tsrc, hd)
    return kv[0], kv[1]


def enc_attention_block(x, enc_kv, lp, num_heads):
    """Pre-LN encoder-decoder attention + residual.  x: (T, B, C)."""
    T, B, C = x.shape
    H, hd = num_heads, C // num_heads
    x2 = x.reshape(T * B, C)
    ap = lp["enc_attn"]
    q = fused_linear(x2, ap["q_w"], ap["q_b"],
                     gamma=lp["ea_ln_g"], beta=lp["ea_ln_b"])            # (T*B, C)
    q = q.reshape(T, B, H, hd).transpose(1, 2, 0, 3).reshape(B * H, T, hd)
    k, v = enc_kv
    o = attention(q, k, v, None)                                         # no mask -> skipped add
    o = o.reshape(B, H, T, hd).transpose(2, 0, 1, 3).reshape(T * B, C)
    out = fused_linear(o, ap["out_w"], ap["out_b"], residual=x2)
    return out.reshape(T, B, C)


def ffn_block(x, lp):
    T, B, C = x.shape
    x2 = x.reshape(T * B, C)
    h = fused_linear(x2, lp["fc1_w"], lp["fc1_b"],
                     gamma=lp["fi_ln_g"], beta=lp["fi_ln_b"], relu=True)  # LN + fc1 + ReLU
    out = fused_linear(h, lp["fc2_w"], lp["fc2_b"], residual=x2)          # fc2 + residual
    return out.reshape(T, B, C)


def decoder_layer(x, enc_kv, lp, num_heads, self_attn_mask):
    x = self_attention_block(x, lp, num_heads, self_attn_mask)
    if enc_kv is not None:
        x = enc_attention_block(x, enc_kv, lp, num_heads)
    x = ffn_block(x, lp)
    return x


def sinusoidal_positions(tokens, padding_idx, dim):
    """fairseq SinusoidalPositionalEmbedding lookup, (B, T) -> (B, T, dim)."""
    B, T = tokens.shape
    mask = (tokens != padding_idx).astype(jnp.int32)
    positions = jnp.cumsum(mask, axis=1) * mask + padding_idx            # (B, T)
    num_emb = padding_idx + 1 + T + 1
    half = dim // 2
    inv = math.log(10000.0) / (half - 1)
    freqs = jnp.exp(jnp.arange(half, dtype=jnp.float32) * -inv)
    ang = jnp.arange(num_emb, dtype=jnp.float32)[:, None] * freqs[None, :]
    table = jnp.concatenate([jnp.sin(ang), jnp.cos(ang)], axis=1)
    if dim % 2 == 1:
        table = jnp.concatenate([table, jnp.zeros((num_emb, 1), jnp.float32)], axis=1)
    table = table.at[padding_idx].set(0.0)
    return table[positions]


def future_mask(T):
    i = jnp.arange(T)[:, None]
    j = jnp.arange(T)[None, :]
    return jnp.where(j > i, -jnp.inf, 0.0).astype(jnp.float32)


def decoder_forward(params, tokens, enc, cfg):
    """tokens: (B, T) int32; enc: (Tsrc, B, Cenc) or None -> logits (B, T, vocab)."""
    B, T = tokens.shape
    C = cfg["embed_dim"]
    H = cfg["num_heads"]
    embed_scale = math.sqrt(C)

    positions = sinusoidal_positions(tokens, cfg["padding_idx"], C)      # (B, T, C)
    x = embed_scale * params["embed"][tokens] + positions                # (B, T, C)
    # project_in_dim is None (encoder_embed_dim == decoder_embed_dim); dropout = identity
    x = x.transpose(1, 0, 2)                                             # (T, B, C)

    # TODO(synk): self_attn_padding_mask / encoder_padding_mask not implemented
    # (example tokens contain no <pad>, matching the torch path where masks stay None).
    # TODO(synk): incremental_state (KV-cache) decoding path not implemented; eval-only.
    mask = future_mask(T)
    for lp in params["layers"]:
        enc_kv = encoder_kv(enc, lp["enc_attn"], H, C) if enc is not None else None
        x = decoder_layer(x, enc_kv, lp, H, mask)

    # final LayerNorm fused into the vocab projection (no bias)
    xbt = x.transpose(1, 0, 2).reshape(B * T, C)                         # (B*T, C)
    logits = fused_linear(xbt, params["out_proj_w"], None,
                          gamma=params["ln_g"], beta=params["ln_b"])
    return logits.reshape(B, T, cfg["vocab"])


# ------------------------------ param init ---------------------------------- #

def init_params(key, cfg):
    C, F, V = cfg["embed_dim"], cfg["ffn_dim"], cfg["vocab"]
    H = cfg["num_heads"]
    hd = C // H
    scaling = hd ** -0.5
    wdt = jnp.bfloat16   # MXU weight storage dtype

    def nrm(k, shape, std):
        return std * jax.random.normal(k, shape, jnp.float32)

    keys = iter(jax.random.split(key, 1024))
    params = {}
    emb = nrm(next(keys), (V, C), C ** -0.5)
    params["embed"] = emb.at[cfg["padding_idx"]].set(0.0)

    def self_attn_params():
        # weights stored pre-transposed (K, N); q part pre-scaled by head_dim**-0.5
        q_w = nrm(next(keys), (C, C), 0.02) * scaling
        k_w = nrm(next(keys), (C, C), 0.02)
        v_w = nrm(next(keys), (C, C), 0.02)
        return {
            "qkv_w": jnp.concatenate([q_w, k_w, v_w], axis=1).astype(wdt),   # (C, 3C)
            "qkv_b": jnp.zeros((3 * C,), jnp.float32),
            "out_w": nrm(next(keys), (C, C), 0.02).astype(wdt),
            "out_b": jnp.zeros((C,), jnp.float32),
        }

    def enc_attn_params(kdim):
        q_w = nrm(next(keys), (C, C), 0.02) * scaling
        k_w = nrm(next(keys), (kdim, C), 0.02)
        v_w = nrm(next(keys), (kdim, C), 0.02)
        return {
            "q_w": q_w.astype(wdt), "q_b": jnp.zeros((C,), jnp.float32),
            "kv_w": jnp.concatenate([k_w, v_w], axis=1).astype(wdt),         # (kdim, 2C)
            "kv_b": jnp.zeros((2 * C,), jnp.float32),
            "out_w": nrm(next(keys), (C, C), 0.02).astype(wdt),
            "out_b": jnp.zeros((C,), jnp.float32),
        }

    layers = []
    for _ in range(cfg["num_layers"]):
        layers.append({
            "self_attn": self_attn_params(),
            "sa_ln_g": jnp.ones((C,), jnp.float32), "sa_ln_b": jnp.zeros((C,), jnp.float32),
            "enc_attn": enc_attn_params(cfg["encoder_embed_dim"]),
            "ea_ln_g": jnp.ones((C,), jnp.float32), "ea_ln_b": jnp.zeros((C,), jnp.float32),
            "fc1_w": nrm(next(keys), (C, F), 0.02).astype(wdt),
            "fc1_b": jnp.zeros((F,), jnp.float32),
            "fc2_w": nrm(next(keys), (F, C), 0.02).astype(wdt),
            "fc2_b": jnp.zeros((C,), jnp.float32),
            "fi_ln_g": jnp.ones((C,), jnp.float32), "fi_ln_b": jnp.zeros((C,), jnp.float32),
        })
    params["layers"] = layers
    params["ln_g"] = jnp.ones((C,), jnp.float32)
    params["ln_b"] = jnp.zeros((C,), jnp.float32)
    params["out_proj_w"] = nrm(next(keys), (C, V), C ** -0.5).astype(wdt)
    return params


# --------------------------------- main -------------------------------------- #

if __name__ == "__main__":
    cfg = dict(
        vocab=16,
        embed_dim=32,
        encoder_embed_dim=32,
        ffn_dim=64,
        num_heads=4,
        num_layers=2,
        padding_idx=1,
    )
    B, T, Tsrc = 2, 8, 8

    root = jax.random.PRNGKey(0)
    k_par, k_tok, k_enc = jax.random.split(root, 3)
    params = init_params(k_par, cfg)

    # target tokens in [2, vocab) — no <pad>, so self_attn_padding_mask stays None
    prev_output_tokens = jax.random.randint(k_tok, (B, T), 2, cfg["vocab"], jnp.int32)
    # encoder_out['encoder_out'] is T x B x C in the torch module
    encoder_out = jax.random.normal(k_enc, (Tsrc, B, cfg["encoder_embed_dim"]), jnp.float32)

    fwd = jax.jit(partial(decoder_forward, cfg=cfg))
    logits = fwd(params, prev_output_tokens, encoder_out)
    logits = jax.block_until_ready(logits)

    assert logits.shape == (B, T, cfg["vocab"])
    assert bool(jnp.all(jnp.isfinite(logits)))
    print("KERNEL_OK")
</pallas_src>

<mosaic_0001>
module attributes {stable_mosaic.version = 11 : i64} {
  func.func @_fused_linear_kernel(%arg0: i32, %arg1: i32, %arg2: memref<16x32xf32, #tpu.memory_space<vmem>>, %arg3: memref<32x32xbf16, #tpu.memory_space<vmem>>, %arg4: memref<1x32xf32, #tpu.memory_space<vmem>>, %arg5: memref<16x32xf32, #tpu.memory_space<vmem>>, %arg6: memref<16x32xf32, #tpu.memory_space<vmem>>) attributes {dimension_semantics = [#tpu.dimension_semantics<parallel>, #tpu.dimension_semantics<parallel>], iteration_bounds = array<i64: 1, 1>, scalar_prefetch = 0 : i64, scratch_operands = 0 : i64, tpu.core_type = #tpu.core_type<tc>, window_params = [{transform_indices = @transform_0, window_bounds = array<i64: 16, 32>}, {transform_indices = @transform_1, window_bounds = array<i64: 32, 32>}, {transform_indices = @transform_2, window_bounds = array<i64: 1, 32>}, {transform_indices = @transform_3, window_bounds = array<i64: 16, 32>}, {transform_indices = @transform_4, window_bounds = array<i64: 16, 32>}]} {
    %c0 = arith.constant 0 : index
    %c0_0 = arith.constant 0 : index
    %0 = vector.load %arg2[%c0, %c0_0] : memref<16x32xf32, #tpu.memory_space<vmem>>, vector<16x32xf32>
    %c0_1 = arith.constant 0 : index
    %c0_2 = arith.constant 0 : index
    %1 = vector.load %arg3[%c0_1, %c0_2] : memref<32x32xbf16, #tpu.memory_space<vmem>>, vector<32x32xbf16>
    %2 = arith.truncf %0 : vector<16x32xf32> to vector<16x32xbf16>
    %cst = arith.constant dense<0.000000e+00> : vector<16x32xf32>
    %3 = tpu.matmul %2, %1, %cst {dimension_numbers = #tpu.dot_dimension_numbers<[1], [0], [0], [1], [0, 0, 1, 1], [], []>} : vector<16x32xbf16>, vector<32x32xbf16>, vector<16x32xf32> -> vector<16x32xf32>
    %c0_3 = arith.constant 0 : index
    %c0_4 = arith.constant 0 : index
    %4 = vector.load %arg4[%c0_3, %c0_4] : memref<1x32xf32, #tpu.memory_space<vmem>>, vector<1x32xf32>
    %5 = vector.broadcast %4 : vector<1x32xf32> to vector<16x32xf32>
    %6 = arith.addf %3, %5 : vector<16x32xf32>
    %c0_5 = arith.constant 0 : index
    %c0_6 = arith.constant 0 : index
    %7 = vector.load %arg5[%c0_5, %c0_6] : memref<16x32xf32, #tpu.memory_space<vmem>>, vector<16x32xf32>
    %8 = arith.addf %6, %7 : vector<16x32xf32>
    %c0_7 = arith.constant 0 : index
    %c0_8 = arith.constant 0 : index
    %9 = vector.load %arg6[%c0_7, %c0_8] : memref<16x32xf32, #tpu.memory_space<vmem>>, vector<16x32xf32>
    tpu.vector_store %arg6[%c0_7, %c0_8], %8 {strides = array<i32>} : memref<16x32xf32, #tpu.memory_space<vmem>>, vector<16x32xf32>,
    return
  }
  func.func @transform_0(%arg0: i32, %arg1: i32) -> (i32, i32) {
    %c0_i32 = arith.constant 0 : i32
    %c0_i32_0 = arith.constant 0 : i32
    return %arg0, %c0_i32 : i32, i32
  }
  func.func @transform_1(%arg0: i32, %arg1: i32) -> (i32, i32) {
    %c0_i32 = arith.constant 0 : i32
    %c0_i32_0 = arith.constant 0 : i32
    return %c0_i32, %arg1 : i32, i32
  }
  func.func @transform_2(%arg0: i32, %arg1: i32) -> (i32, i32) {
    %c0_i32 = arith.constant 0 : i32
    %c0_i32_0 = arith.constant 0 : i32
    return %c0_i32, %arg1 : i32, i32
  }
  func.func @transform_3(%arg0: i32, %arg1: i32) -> (i32, i32) {
    %c0_i32 = arith.constant 0 : i32
    return %arg0, %arg1 : i32, i32
  }
  func.func @transform_4(%arg0: i32, %arg1: i32) -> (i32, i32) {
    %c0_i32 = arith.constant 0 : i32
    return %arg0, %arg1 : i32, i32
  }
}

module attributes {stable_mosaic.version = 11 : i64} {
  func.func @_fused_linear_kernel(%arg0: i32, %arg1: i32, %arg2: memref<16x32xf32, #tpu.memory_space<vmem>>, %arg3: memref<1x32xf32, #tpu.memory_space<vmem>>, %arg4: memref<1x32xf32, #tpu.memory_space<vmem>>, %arg5: memref<32x96xbf16, #tpu.memory_space<vmem>>, %arg6: memref<1x96xf32, #tpu.memory_space<vmem>>, %arg7: memref<16x96xf32, #tpu.memory_space<vmem>>) attributes {dimension_semantics = [#tpu.dimension_semantics<parallel>, #tpu.dimension_semantics<parallel>], iteration_bounds = array<i64: 1, 1>, scalar_prefetch = 0 : i64, scratch_operands = 0 : i64, tpu.core_type = #tpu.core_type<tc>, window_params = [{transform_indices = @transform_0, window_bounds = array<i64: 16, 32>}, {pipeline_mode = #tpu.pipeline_mode<synchronous>, transform_indices = @transform_1, window_bounds = array<i64: 1, 32>}, {pipeline_mode = #tpu.pipeline_mode<synchronous>, transform_indices = @transform_2, window_bounds = array<i64: 1, 32>}, {transform_indices = @transform_3, window_bounds = array<i64: 32, 96>}, {transform_indices = @transform_4, window_bounds = array<i64: 1, 96>}, {transform_indices = @transform_5, window_bounds = array<i64: 16, 96>}]} {
    %c0 = arith.constant 0 : index
    %c0_0 = arith.constant 0 : index
    %0 = vector.load %arg2[%c0, %c0_0] : memref<16x32xf32, #tpu.memory_space<vmem>>, vector<16x32xf32>
    %c0_1 = arith.constant 0 : index
    %c0_2 = arith.constant 0 : index
    %1 = vector.load %arg3[%c0_1, %c0_2] : memref<1x32xf32, #tpu.memory_space<vmem>>, vector<1x32xf32>
    %c0_3 = arith.constant 0 : index
    %c0_4 = arith.constant 0 : index
    %2 = vector.load %arg4[%c0_3, %c0_4] : memref<1x32xf32, #tpu.memory_space<vmem>>, vector<1x32xf32>
    %cst = arith.constant dense<0.000000e+00> : vector<16xf32>
    %3 = vector.multi_reduction <add>, %0, %cst [1] : vector<16x32xf32> to vector<16xf32>
    %4 = vector.shape_cast %3 : vector<16xf32> to vector<16x1xf32>
    %cst_5 = arith.constant 3.200000e+01 : f32
    %5 = vector.broadcast %cst_5 : f32 to vector<16x1xf32>
    %6 = arith.divf %4, %5 : vector<16x1xf32>
    %7 = vector.broadcast %6 : vector<16x1xf32> to vector<16x32xf32>
    %8 = arith.subf %0, %7 : vector<16x32xf32>
    %9 = arith.mulf %8, %8 : vector<16x32xf32>
    %cst_6 = arith.constant dense<0.000000e+00> : vector<16xf32>
    %10 = vector.multi_reduction <add>, %9, %cst_6 [1] : vector<16x32xf32> to vector<16xf32>
    %11 = vector.shape_cast %10 : vector<16xf32> to vector<16x1xf32>
    %cst_7 = arith.constant 3.200000e+01 : f32
    %12 = vector.broadcast %cst_7 : f32 to vector<16x1xf32>
    %13 = arith.divf %11, %12 : vector<16x1xf32>
    %cst_8 = arith.constant 9.99999974E-6 : f32
    %14 = vector.broadcast %cst_8 : f32 to vector<16x1xf32>
    %15 = arith.addf %13, %14 : vector<16x1xf32>
    %16 = math.rsqrt %15 : vector<16x1xf32>
    %17 = vector.broadcast %16 : vector<16x1xf32> to vector<16x32xf32>
    %18 = arith.mulf %8, %17 : vector<16x32xf32>
    %19 = vector.broadcast %1 : vector<1x32xf32> to vector<16x32xf32>
    %20 = arith.mulf %18, %19 : vector<16x32xf32>
    %21 = vector.broadcast %2 : vector<1x32xf32> to vector<16x32xf32>
    %22 = arith.addf %20, %21 : vector<16x32xf32>
    %c0_9 = arith.constant 0 : index
    %c0_10 = arith.constant 0 : index
    %23 = vector.load %arg5[%c0_9, %c0_10] : memref<32x96xbf16, #tpu.memory_space<vmem>>, vector<32x96xbf16>
    %24 = arith.truncf %22 : vector<16x32xf32> to vector<16x32xbf16>
    %cst_11 = arith.constant dense<0.000000e+00> : vector<16x96xf32>
    %25 = tpu.matmul %24, %23, %cst_11 {dimension_numbers = #tpu.dot_dimension_numbers<[1], [0], [0], [1], [0, 0, 1, 1], [], []>} : vector<16x32xbf16>, vector<32x96xbf16>, vector<16x96xf32> -> vector<16x96xf32>
    %c0_12 = arith.constant 0 : index
    %c0_13 = arith.constant 0 : index
    %26 = vector.load %arg6[%c0_12, %c0_13] : memref<1x96xf32, #tpu.memory_space<vmem>>, vector<1x96xf32>
    %27 = vector.broadcast %26 : vector<1x96xf32> to vector<16x96xf32>
    %28 = arith.addf %25, %27 : vector<16x96xf32>
    %c0_14 = arith.constant 0 : index
    %c0_15 = arith.constant 0 : index
    %29 = vector.load %arg7[%c0_14, %c0_15] : memref<16x96xf32, #tpu.memory_space<vmem>>, vector<16x96xf32>
    tpu.vector_store %arg7[%c0_14, %c0_15], %28 {strides = array<i32>} : memref<16x96xf32, #tpu.memory_space<vmem>>, vector<16x96xf32>,
    return
  }
  func.func @transform_0(%arg0: i32, %arg1: i32) -> (i32, i32) {
    %c0_i32 = arith.constant 0 : i32
    %c0_i32_0 = arith.constant 0 : i32
    return %arg0, %c0_i32 : i32, i32
  }
  func.func @transform_1(%arg0: i32, %arg1: i32) -> (i32, i32) {
    %c0_i32 = arith.constant 0 : i32
    %c0_i32_0 = arith.constant 0 : i32
    %c0_i32_1 = arith.constant 0 : i32
    return %c0_i32, %c0_i32_0 : i32, i32
  }
  func.func @transform_2(%arg0: i32, %arg1: i32) -> (i32, i32) {
    %c0_i32 = arith.constant 0 : i32
    %c0_i32_0 = arith.constant 0 : i32
    %c0_i32_1 = arith.constant 0 : i32
    return %c0_i32, %c0_i32_0 : i32, i32
  }
  func.func @transform_3(%arg0: i32, %arg1: i32) -> (i32, i32) {
    %c0_i32 = arith.constant 0 : i32
    %c0_i32_0 = arith.constant 0 : i32
    return %c0_i32, %arg1 : i32, i32
  }
  func.func @transform_4(%arg0: i32, %arg1: i32) -> (i32, i32) {
    %c0_i32 = arith.constant 0 : i32
    %c0_i32_0 = arith.constant 0 : i32
    return %c0_i32, %arg1 : i32, i32
  }
  func.func @transform_5(%arg0: i32, %arg1: i32) -> (i32, i32) {
    %c0_i32 = arith.constant 0 : i32
    return %arg0, %arg1 : i32, i32
  }
}

module attributes {stable_mosaic.version = 11 : i64} {
  func.func @_attn_kernel(%arg0: i32, %arg1: memref<8x8x8xf32, #tpu.memory_space<vmem>>, %arg2: memref<8x8x8xf32, #tpu.memory_space<vmem>>, %arg3: memref<8x8x8xf32, #tpu.memory_space<vmem>>, %arg4: memref<8x8xf32, #tpu.memory_space<vmem>>, %arg5: memref<8x8x8xf32, #tpu.memory_space<vmem>>) attributes {dimension_semantics = [#tpu.dimension_semantics<parallel>], iteration_bounds = array<i64: 1>, scalar_prefetch = 0 : i64, scratch_operands = 0 : i64, tpu.core_type = #tpu.core_type<tc>, window_params = [{transform_indices = @transform_0, window_bounds = array<i64: 8, 8, 8>}, {transform_indices = @transform_1, window_bounds = array<i64: 8, 8, 8>}, {transform_indices = @transform_2, window_bounds = array<i64: 8, 8, 8>}, {pipeline_mode = #tpu.pipeline_mode<synchronous>, transform_indices = @transform_3, window_bounds = array<i64: 8, 8>}, {transform_indices = @transform_4, window_bounds = array<i64: 8, 8, 8>}]} {
    %c0 = arith.constant 0 : index
    %c0_0 = arith.constant 0 : index
    %c0_1 = arith.constant 0 : index
    %0 = vector.load %arg1[%c0, %c0_0, %c0_1] : memref<8x8x8xf32, #tpu.memory_space<vmem>>, vector<8x8x8xf32>
    %1 = arith.truncf %0 : vector<8x8x8xf32> to vector<8x8x8xbf16>
    %c0_2 = arith.constant 0 : index
    %c0_3 = arith.constant 0 : index
    %c0_4 = arith.constant 0 : index
    %2 = vector.load %arg2[%c0_2, %c0_3, %c0_4] : memref<8x8x8xf32, #tpu.memory_space<vmem>>, vector<8x8x8xf32>
    %3 = arith.truncf %2 : vector<8x8x8xf32> to vector<8x8x8xbf16>
    %c0_5 = arith.constant 0 : index
    %c0_6 = arith.constant 0 : index
    %c0_7 = arith.constant 0 : index
    %4 = vector.load %arg3[%c0_5, %c0_6, %c0_7] : memref<8x8x8xf32, #tpu.memory_space<vmem>>, vector<8x8x8xf32>
    %5 = arith.truncf %4 : vector<8x8x8xf32> to vector<8x8x8xbf16>
    "tpu.trace_start"() <{level = 10 : i32, message = "bqd,bkd->bqk"}> : () -> ()
    %cst = arith.constant dense<0.000000e+00> : vector<8x8x8xf32>
    %6 = tpu.matmul %1, %3, %cst {dimension_numbers = #tpu.dot_dimension_numbers<[2], [2], [1], [1], [0, 0, 0, 1, 1, 1], [0], [0]>} : vector<8x8x8xbf16>, vector<8x8x8xbf16>, vector<8x8x8xf32> -> vector<8x8x8xf32>
    "tpu.trace_stop"() : () -> ()
    %c0_8 = arith.constant 0 : index
    %c0_9 = arith.constant 0 : index
    %7 = vector.load %arg4[%c0_8, %c0_9] : memref<8x8xf32, #tpu.memory_space<vmem>>, vector<8x8xf32>
    %8 = vector.shape_cast %7 : vector<8x8xf32> to vector<1x8x8xf32>
    %9 = vector.broadcast %8 : vector<1x8x8xf32> to vector<8x8x8xf32>
    %10 = arith.addf %6, %9 : vector<8x8x8xf32>
    %cst_10 = arith.constant dense<0xFF800000> : vector<8x8xf32>
    %11 = vector.multi_reduction <maximumf>, %10, %cst_10 [2] : vector<8x8x8xf32> to vector<8x8xf32>
    %12 = vector.shape_cast %11 : vector<8x8xf32> to vector<8x8x1xf32>
    %13 = vector.broadcast %12 : vector<8x8x1xf32> to vector<8x8x8xf32>
    %14 = arith.subf %10, %13 : vector<8x8x8xf32>
    %15 = math.exp %14 : vector<8x8x8xf32>
    %cst_11 = arith.constant dense<0.000000e+00> : vector<8x8xf32>
    %16 = vector.multi_reduction <add>, %15, %cst_11 [2] : vector<8x8x8xf32> to vector<8x8xf32>
    %17 = vector.shape_cast %16 : vector<8x8xf32> to vector<8x8x1xf32>
    %18 = tpu.reciprocal %17 {approx = true} : vector<8x8x1xf32> -> vector<8x8x1xf32>
    %19 = vector.broadcast %18 : vector<8x8x1xf32> to vector<8x8x8xf32>
    %20 = arith.mulf %15, %19 : vector<8x8x8xf32>
    %21 = arith.truncf %20 : vector<8x8x8xf32> to vector<8x8x8xbf16>
    "tpu.trace_start"() <{level = 10 : i32, message = "bqk,bkd->bqd"}> : () -> ()
    %cst_12 = arith.constant dense<0.000000e+00> : vector<8x8x8xf32>
    %22 = tpu.matmul %21, %5, %cst_12 {dimension_numbers = #tpu.dot_dimension_numbers<[2], [1], [1], [2], [0, 0, 0, 1, 1, 2], [0], [0]>} : vector<8x8x8xbf16>, vector<8x8x8xbf16>, vector<8x8x8xf32> -> vector<8x8x8xf32>
    "tpu.trace_stop"() : () -> ()
    %c0_13 = arith.constant 0 : index
    %c0_14 = arith.constant 0 : index
    %c0_15 = arith.constant 0 : index
    %23 = vector.load %arg5[%c0_13, %c0_14, %c0_15] : memref<8x8x8xf32, #tpu.memory_space<vmem>>, vector<8x8x8xf32>
    tpu.vector_store %arg5[%c0_13, %c0_14, %c0_15], %22 {strides = array<i32>} : memref<8x8x8xf32, #tpu.memory_space<vmem>>, vector<8x8x8xf32>,
    return
  }
  func.func @transform_0(%arg0: i32) -> (i32, i32, i32) {
    %c0_i32 = arith.constant 0 : i32
    %c0_i32_0 = arith.constant 0 : i32
    %c0_i32_1 = arith.constant 0 : i32
    return %arg0, %c0_i32, %c0_i32_0 : i32, i32, i32
  }
  func.func @transform_1(%arg0: i32) -> (i32, i32, i32) {
    %c0_i32 = arith.constant 0 : i32
    %c0_i32_0 = arith.constant 0 : i32
    %c0_i32_1 = arith.constant 0 : i32
    return %arg0, %c0_i32, %c0_i32_0 : i32, i32, i32
  }
  func.func @transform_2(%arg0: i32) -> (i32, i32, i32) {
    %c0_i32 = arith.constant 0 : i32
    %c0_i32_0 = arith.constant 0 : i32
    %c0_i32_1 = arith.constant 0 : i32
    return %arg0, %c0_i32, %c0_i32_0 : i32, i32, i32
  }
  func.func @transform_3(%arg0: i32) -> (i32, i32) {
    %c0_i32 = arith.constant 0 : i32
    %c0_i32_0 = arith.constant 0 : i32
    %c0_i32_1 = arith.constant 0 : i32
    return %c0_i32, %c0_i32_0 : i32, i32
  }
  func.func @transform_4(%arg0: i32) -> (i32, i32, i32) {
    %c0_i32 = arith.constant 0 : i32
    %c0_i32_0 = arith.constant 0 : i32
    %c0_i32_1 = arith.constant 0 : i32
    return %arg0, %c0_i32, %c0_i32_0 : i32, i32, i32
  }
}

module attributes {stable_mosaic.version = 11 : i64} {
  func.func @_fused_linear_kernel(%arg0: i32, %arg1: i32, %arg2: memref<16x32xf32, #tpu.memory_space<vmem>>, %arg3: memref<1x32xf32, #tpu.memory_space<vmem>>, %arg4: memref<1x32xf32, #tpu.memory_space<vmem>>, %arg5: memref<32x32xbf16, #tpu.memory_space<vmem>>, %arg6: memref<1x32xf32, #tpu.memory_space<vmem>>, %arg7: memref<16x32xf32, #tpu.memory_space<vmem>>) attributes {dimension_semantics = [#tpu.dimension_semantics<parallel>, #tpu.dimension_semantics<parallel>], iteration_bounds = array<i64: 1, 1>, scalar_prefetch = 0 : i64, scratch_operands = 0 : i64, tpu.core_type = #tpu.core_type<tc>, window_params = [{transform_indices = @transform_0, window_bounds = array<i64: 16, 32>}, {pipeline_mode = #tpu.pipeline_mode<synchronous>, transform_indices = @transform_1, window_bounds = array<i64: 1, 32>}, {pipeline_mode = #tpu.pipeline_mode<synchronous>, transform_indices = @transform_2, window_bounds = array<i64: 1, 32>}, {transform_indices = @transform_3, window_bounds = array<i64: 32, 32>}, {transform_indices = @transform_4, window_bounds = array<i64: 1, 32>}, {transform_indices = @transform_5, window_bounds = array<i64: 16, 32>}]} {
    %c0 = arith.constant 0 : index
    %c0_0 = arith.constant 0 : index
    %0 = vector.load %arg2[%c0, %c0_0] : memref<16x32xf32, #tpu.memory_space<vmem>>, vector<16x32xf32>
    %c0_1 = arith.constant 0 : index
    %c0_2 = arith.constant 0 : index
    %1 = vector.load %arg3[%c0_1, %c0_2] : memref<1x32xf32, #tpu.memory_space<vmem>>, vector<1x32xf32>
    %c0_3 = arith.constant 0 : index
    %c0_4 = arith.constant 0 : index
    %2 = vector.load %arg4[%c0_3, %c0_4] : memref<1x32xf32, #tpu.memory_space<vmem>>, vector<1x32xf32>
    %cst = arith.constant dense<0.000000e+00> : vector<16xf32>
    %3 = vector.multi_reduction <add>, %0, %cst [1] : vector<16x32xf32> to vector<16xf32>
    %4 = vector.shape_cast %3 : vector<16xf32> to vector<16x1xf32>
    %cst_5 = arith.constant 3.200000e+01 : f32
    %5 = vector.broadcast %cst_5 : f32 to vector<16x1xf32>
    %6 = arith.divf %4, %5 : vector<16x1xf32>
    %7 = vector.broadcast %6 : vector<16x1xf32> to vector<16x32xf32>
    %8 = arith.subf %0, %7 : vector<16x32xf32>
    %9 = arith.mulf %8, %8 : vector<16x32xf32>
    %cst_6 = arith.constant dense<0.000000e+00> : vector<16xf32>
    %10 = vector.multi_reduction <add>, %9, %cst_6 [1] : vector<16x32xf32> to vector<16xf32>
    %11 = vector.shape_cast %10 : vector<16xf32> to vector<16x1xf32>
    %cst_7 = arith.constant 3.200000e+01 : f32
    %12 = vector.broadcast %cst_7 : f32 to vector<16x1xf32>
    %13 = arith.divf %11, %12 : vector<16x1xf32>
    %cst_8 = arith.constant 9.99999974E-6 : f32
    %14 = vector.broadcast %cst_8 : f32 to vector<16x1xf32>
    %15 = arith.addf %13, %14 : vector<16x1xf32>
    %16 = math.rsqrt %15 : vector<16x1xf32>
    %17 = vector.broadcast %16 : vector<16x1xf32> to vector<16x32xf32>
    %18 = arith.mulf %8, %17 : vector<16x32xf32>
    %19 = vector.broadcast %1 : vector<1x32xf32> to vector<16x32xf32>
    %20 = arith.mulf %18, %19 : vector<16x32xf32>
    %21 = vector.broadcast %2 : vector<1x32xf32> to vector<16x32xf32>
    %22 = arith.addf %20, %21 : vector<16x32xf32>
    %c0_9 = arith.constant 0 : index
    %c0_10 = arith.constant 0 : index
    %23 = vector.load %arg5[%c0_9, %c0_10] : memref<32x32xbf16, #tpu.memory_space<vmem>>, vector<32x32xbf16>
    %24 = arith.truncf %22 : vector<16x32xf32> to vector<16x32xbf16>
    %cst_11 = arith.constant dense<0.000000e+00> : vector<16x32xf32>
    %25 = tpu.matmul %24, %23, %cst_11 {dimension_numbers = #tpu.dot_dimension_numbers<[1], [0], [0], [1], [0, 0, 1, 1], [], []>} : vector<16x32xbf16>, vector<32x32xbf16>, vector<16x32xf32> -> vector<16x32xf32>
    %c0_12 = arith.constant 0 : index
    %c0_13 = arith.constant 0 : index
    %26 = vector.load %arg6[%c0_12, %c0_13] : memref<1x32xf32, #tpu.memory_space<vmem>>, vector<1x32xf32>
    %27 = vector.broadcast %26 : vector<1x32xf32> to vector<16x32xf32>
    %28 = arith.addf %25, %27 : vector<16x32xf32>
    %c0_14 = arith.constant 0 : index
    %c0_15 = arith.constant 0 : index
    %29 = vector.load %arg7[%c0_14, %c0_15] : memref<16x32xf32, #tpu.memory_space<vmem>>, vector<16x32xf32>
    tpu.vector_store %arg7[%c0_14, %c0_15], %28 {strides = array<i32>} : memref<16x32xf32, #tpu.memory_space<vmem>>, vector<16x32xf32>,
    return
  }
  func.func @transform_0(%arg0: i32, %arg1: i32) -> (i32, i32) {
    %c0_i32 = arith.constant 0 : i32
    %c0_i32_0 = arith.constant 0 : i32
    return %arg0, %c0_i32 : i32, i32
  }
  func.func @transform_1(%arg0: i32, %arg1: i32) -> (i32, i32) {
    %c0_i32 = arith.constant 0 : i32
    %c0_i32_0 = arith.constant 0 : i32
    %c0_i32_1 = arith.constant 0 : i32
    return %c0_i32, %c0_i32_0 : i32, i32
  }
  func.func @transform_2(%arg0: i32, %arg1: i32) -> (i32, i32) {
    %c0_i32 = arith.constant 0 : i32
    %c0_i32_0 = arith.constant 0 : i32
    %c0_i32_1 = arith.constant 0 : i32
    return %c0_i32, %c0_i32_0 : i32, i32
  }
  func.func @transform_3(%arg0: i32, %arg1: i32) -> (i32, i32) {
    %c0_i32 = arith.constant 0 : i32
    %c0_i32_0 = arith.constant 0 : i32
    return %c0_i32, %arg1 : i32, i32
  }
  func.func @transform_4(%arg0: i32, %arg1: i32) -> (i32, i32) {
    %c0_i32 = arith.constant 0 : i32
    %c0_i32_0 = arith.constant 0 : i32
    return %c0_i32, %arg1 : i32, i32
  }
  func.func @transform_5(%arg0: i32, %arg1: i32) -> (i32, i32) {
    %c0_i32 = arith.constant 0 : i32
    return %arg0, %arg1 : i32, i32
  }
}

module attributes {stable_mosaic.version = 11 : i64} {
  func.func @_fused_linear_kernel(%arg0: i32, %arg1: i32, %arg2: memref<16x32xf32, #tpu.memory_space<vmem>>, %arg3: memref<32x64xbf16, #tpu.memory_space<vmem>>, %arg4: memref<1x64xf32, #tpu.memory_space<vmem>>, %arg5: memref<16x64xf32, #tpu.memory_space<vmem>>) attributes {dimension_semantics = [#tpu.dimension_semantics<parallel>, #tpu.dimension_semantics<parallel>], iteration_bounds = array<i64: 1, 1>, scalar_prefetch = 0 : i64, scratch_operands = 0 : i64, tpu.core_type = #tpu.core_type<tc>, window_params = [{transform_indices = @transform_0, window_bounds = array<i64: 16, 32>}, {transform_indices = @transform_1, window_bounds = array<i64: 32, 64>}, {transform_indices = @transform_2, window_bounds = array<i64: 1, 64>}, {transform_indices = @transform_3, window_bounds = array<i64: 16, 64>}]} {
    %c0 = arith.constant 0 : index
    %c0_0 = arith.constant 0 : index
    %0 = vector.load %arg2[%c0, %c0_0] : memref<16x32xf32, #tpu.memory_space<vmem>>, vector<16x32xf32>
    %c0_1 = arith.constant 0 : index
    %c0_2 = arith.constant 0 : index
    %1 = vector.load %arg3[%c0_1, %c0_2] : memref<32x64xbf16, #tpu.memory_space<vmem>>, vector<32x64xbf16>
    %2 = arith.truncf %0 : vector<16x32xf32> to vector<16x32xbf16>
    %cst = arith.constant dense<0.000000e+00> : vector<16x64xf32>
    %3 = tpu.matmul %2, %1, %cst {dimension_numbers = #tpu.dot_dimension_numbers<[1], [0], [0], [1], [0, 0, 1, 1], [], []>} : vector<16x32xbf16>, vector<32x64xbf16>, vector<16x64xf32> -> vector<16x64xf32>
    %c0_3 = arith.constant 0 : index
    %c0_4 = arith.constant 0 : index
    %4 = vector.load %arg4[%c0_3, %c0_4] : memref<1x64xf32, #tpu.memory_space<vmem>>, vector<1x64xf32>
    %5 = vector.broadcast %4 : vector<1x64xf32> to vector<16x64xf32>
    %6 = arith.addf %3, %5 : vector<16x64xf32>
    %c0_5 = arith.constant 0 : index
    %c0_6 = arith.constant 0 : index
    %7 = vector.load %arg5[%c0_5, %c0_6] : memref<16x64xf32, #tpu.memory_space<vmem>>, vector<16x64xf32>
    tpu.vector_store %arg5[%c0_5, %c0_6], %6 {strides = array<i32>} : memref<16x64xf32, #tpu.memory_space<vmem>>, vector<16x64xf32>,
    return
  }
  func.func @transform_0(%arg0: i32, %arg1: i32) -> (i32, i32) {
    %c0_i32 = arith.constant 0 : i32
    %c0_i32_0 = arith.constant 0 : i32
    return %arg0, %c0_i32 : i32, i32
  }
  func.func @transform_1(%arg0: i32, %arg1: i32) -> (i32, i32) {
    %c0_i32 = arith.constant 0 : i32
    %c0_i32_0 = arith.constant 0 : i32
    return %c0_i32, %arg1 : i32, i32
  }
  func.func @transform_2(%arg0: i32, %arg1: i32) -> (i32, i32) {
    %c0_i32 = arith.constant 0 : i32
    %c0_i32_0 = arith.constant 0 : i32
    return %c0_i32, %arg1 : i32, i32
  }
  func.func @transform_3(%arg0: i32, %arg1: i32) -> (i32, i32) {
    %c0_i32 = arith.constant 0 : i32
    return %arg0, %arg1 : i32, i32
  }
}

module attributes {stable_mosaic.version = 11 : i64} {
  func.func @_attn_kernel(%arg0: i32, %arg1: memref<8x8x8xf32, #tpu.memory_space<vmem>>, %arg2: memref<8x8x8xf32, #tpu.memory_space<vmem>>, %arg3: memref<8x8x8xf32, #tpu.memory_space<vmem>>, %arg4: memref<8x8x8xf32, #tpu.memory_space<vmem>>) attributes {dimension_semantics = [#tpu.dimension_semantics<parallel>], iteration_bounds = array<i64: 1>, scalar_prefetch = 0 : i64, scratch_operands = 0 : i64, tpu.core_type = #tpu.core_type<tc>, window_params = [{transform_indices = @transform_0, window_bounds = array<i64: 8, 8, 8>}, {transform_indices = @transform_1, window_bounds = array<i64: 8, 8, 8>}, {transform_indices = @transform_2, window_bounds = array<i64: 8, 8, 8>}, {transform_indices = @transform_3, window_bounds = array<i64: 8, 8, 8>}]} {
    %c0 = arith.constant 0 : index
    %c0_0 = arith.constant 0 : index
    %c0_1 = arith.constant 0 : index
    %0 = vector.load %arg1[%c0, %c0_0, %c0_1] : memref<8x8x8xf32, #tpu.memory_space<vmem>>, vector<8x8x8xf32>
    %1 = arith.truncf %0 : vector<8x8x8xf32> to vector<8x8x8xbf16>
    %c0_2 = arith.constant 0 : index
    %c0_3 = arith.constant 0 : index
    %c0_4 = arith.constant 0 : index
    %2 = vector.load %arg2[%c0_2, %c0_3, %c0_4] : memref<8x8x8xf32, #tpu.memory_space<vmem>>, vector<8x8x8xf32>
    %3 = arith.truncf %2 : vector<8x8x8xf32> to vector<8x8x8xbf16>
    %c0_5 = arith.constant 0 : index
    %c0_6 = arith.constant 0 : index
    %c0_7 = arith.constant 0 : index
    %4 = vector.load %arg3[%c0_5, %c0_6, %c0_7] : memref<8x8x8xf32, #tpu.memory_space<vmem>>, vector<8x8x8xf32>
    %5 = arith.truncf %4 : vector<8x8x8xf32> to vector<8x8x8xbf16>
    "tpu.trace_start"() <{level = 10 : i32, message = "bqd,bkd->bqk"}> : () -> ()
    %cst = arith.constant dense<0.000000e+00> : vector<8x8x8xf32>
    %6 = tpu.matmul %1, %3, %cst {dimension_numbers = #tpu.dot_dimension_numbers<[2], [2], [1], [1], [0, 0, 0, 1, 1, 1], [0], [0]>} : vector<8x8x8xbf16>, vector<8x8x8xbf16>, vector<8x8x8xf32> -> vector<8x8x8xf32>
    "tpu.trace_stop"() : () -> ()
    %cst_8 = arith.constant dense<0xFF800000> : vector<8x8xf32>
    %7 = vector.multi_reduction <maximumf>, %6, %cst_8 [2] : vector<8x8x8xf32> to vector<8x8xf32>
    %8 = vector.shape_cast %7 : vector<8x8xf32> to vector<8x8x1xf32>
    %9 = vector.broadcast %8 : vector<8x8x1xf32> to vector<8x8x8xf32>
    %10 = arith.subf %6, %9 : vector<8x8x8xf32>
    %11 = math.exp %10 : vector<8x8x8xf32>
    %cst_9 = arith.constant dense<0.000000e+00> : vector<8x8xf32>
    %12 = vector.multi_reduction <add>, %11, %cst_9 [2] : vector<8x8x8xf32> to vector<8x8xf32>
    %13 = vector.shape_cast %12 : vector<8x8xf32> to vector<8x8x1xf32>
    %14 = tpu.reciprocal %13 {approx = true} : vector<8x8x1xf32> -> vector<8x8x1xf32>
    %15 = vector.broadcast %14 : vector<8x8x1xf32> to vector<8x8x8xf32>
    %16 = arith.mulf %11, %15 : vector<8x8x8xf32>
    %17 = arith.truncf %16 : vector<8x8x8xf32> to vector<8x8x8xbf16>
    "tpu.trace_start"() <{level = 10 : i32, message = "bqk,bkd->bqd"}> : () -> ()
    %cst_10 = arith.constant dense<0.000000e+00> : vector<8x8x8xf32>
    %18 = tpu.matmul %17, %5, %cst_10 {dimension_numbers = #tpu.dot_dimension_numbers<[2], [1], [1], [2], [0, 0, 0, 1, 1, 2], [0], [0]>} : vector<8x8x8xbf16>, vector<8x8x8xbf16>, vector<8x8x8xf32> -> vector<8x8x8xf32>
    "tpu.trace_stop"() : () -> ()
    %c0_11 = arith.constant 0 : index
    %c0_12 = arith.constant 0 : index
    %c0_13 = arith.constant 0 : index
    %19 = vector.load %arg4[%c0_11, %c0_12, %c0_13] : memref<8x8x8xf32, #tpu.memory_space<vmem>>, vector<8x8x8xf32>
    tpu.vector_store %arg4[%c0_11, %c0_12, %c0_13], %18 {strides = array<i32>} : memref<8x8x8xf32, #tpu.memory_space<vmem>>, vector<8x8x8xf32>,
    return
  }
  func.func @transform_0(%arg0: i32) -> (i32, i32, i32) {
    %c0_i32 = arith.constant 0 : i32
    %c0_i32_0 = arith.constant 0 : i32
    %c0_i32_1 = arith.constant 0 : i32
    return %arg0, %c0_i32, %c0_i32_0 : i32, i32, i32
  }
  func.func @transform_1(%arg0: i32) -> (i32, i32, i32) {
    %c0_i32 = arith.constant 0 : i32
    %c0_i32_0 = arith.constant 0 : i32
    %c0_i32_1 = arith.constant 0 : i32
    return %arg0, %c0_i32, %c0_i32_0 : i32, i32, i32
  }
  func.func @transform_2(%arg0: i32) -> (i32, i32, i32) {
    %c0_i32 = arith.constant 0 : i32
    %c0_i32_0 = arith.constant 0 : i32
    %c0_i32_1 = arith.constant 0 : i32
    return %arg0, %c0_i32, %c0_i32_0 : i32, i32, i32
  }
  func.func @transform_3(%arg0: i32) -> (i32, i32, i32) {
    %c0_i32 = arith.constant 0 : i32
    %c0_i32_0 = arith.constant 0 : i32
    %c0_i32_1 = arith.constant 0 : i32
    return %arg0, %c0_i32, %c0_i32_0 : i32, i32, i32
  }
}

module attributes {stable_mosaic.version = 11 : i64} {
  func.func @_fused_linear_kernel(%arg0: i32, %arg1: i32, %arg2: memref<16x32xf32, #tpu.memory_space<vmem>>, %arg3: memref<1x32xf32, #tpu.memory_space<vmem>>, %arg4: memref<1x32xf32, #tpu.memory_space<vmem>>, %arg5: memref<32x64xbf16, #tpu.memory_space<vmem>>, %arg6: memref<1x64xf32, #tpu.memory_space<vmem>>, %arg7: memref<16x64xf32, #tpu.memory_space<vmem>>) attributes {dimension_semantics = [#tpu.dimension_semantics<parallel>, #tpu.dimension_semantics<parallel>], iteration_bounds = array<i64: 1, 1>, scalar_prefetch = 0 : i64, scratch_operands = 0 : i64, tpu.core_type = #tpu.core_type<tc>, window_params = [{transform_indices = @transform_0, window_bounds = array<i64: 16, 32>}, {pipeline_mode = #tpu.pipeline_mode<synchronous>, transform_indices = @transform_1, window_bounds = array<i64: 1, 32>}, {pipeline_mode = #tpu.pipeline_mode<synchronous>, transform_indices = @transform_2, window_bounds = array<i64: 1, 32>}, {transform_indices = @transform_3, window_bounds = array<i64: 32, 64>}, {transform_indices = @transform_4, window_bounds = array<i64: 1, 64>}, {transform_indices = @transform_5, window_bounds = array<i64: 16, 64>}]} {
    %c0 = arith.constant 0 : index
    %c0_0 = arith.constant 0 : index
    %0 = vector.load %arg2[%c0, %c0_0] : memref<16x32xf32, #tpu.memory_space<vmem>>, vector<16x32xf32>
    %c0_1 = arith.constant 0 : index
    %c0_2 = arith.constant 0 : index
    %1 = vector.load %arg3[%c0_1, %c0_2] : memref<1x32xf32, #tpu.memory_space<vmem>>, vector<1x32xf32>
    %c0_3 = arith.constant 0 : index
    %c0_4 = arith.constant 0 : index
    %2 = vector.load %arg4[%c0_3, %c0_4] : memref<1x32xf32, #tpu.memory_space<vmem>>, vector<1x32xf32>
    %cst = arith.constant dense<0.000000e+00> : vector<16xf32>
    %3 = vector.multi_reduction <add>, %0, %cst [1] : vector<16x32xf32> to vector<16xf32>
    %4 = vector.shape_cast %3 : vector<16xf32> to vector<16x1xf32>
    %cst_5 = arith.constant 3.200000e+01 : f32
    %5 = vector.broadcast %cst_5 : f32 to vector<16x1xf32>
    %6 = arith.divf %4, %5 : vector<16x1xf32>
    %7 = vector.broadcast %6 : vector<16x1xf32> to vector<16x32xf32>
    %8 = arith.subf %0, %7 : vector<16x32xf32>
    %9 = arith.mulf %8, %8 : vector<16x32xf32>
    %cst_6 = arith.constant dense<0.000000e+00> : vector<16xf32>
    %10 = vector.multi_reduction <add>, %9, %cst_6 [1] : vector<16x32xf32> to vector<16xf32>
    %11 = vector.shape_cast %10 : vector<16xf32> to vector<16x1xf32>
    %cst_7 = arith.constant 3.200000e+01 : f32
    %12 = vector.broadcast %cst_7 : f32 to vector<16x1xf32>
    %13 = arith.divf %11, %12 : vector<16x1xf32>
    %cst_8 = arith.constant 9.99999974E-6 : f32
    %14 = vector.broadcast %cst_8 : f32 to vector<16x1xf32>
    %15 = arith.addf %13, %14 : vector<16x1xf32>
    %16 = math.rsqrt %15 : vector<16x1xf32>
    %17 = vector.broadcast %16 : vector<16x1xf32> to vector<16x32xf32>
    %18 = arith.mulf %8, %17 : vector<16x32xf32>
    %19 = vector.broadcast %1 : vector<1x32xf32> to vector<16x32xf32>
    %20 = arith.mulf %18, %19 : vector<16x32xf32>
    %21 = vector.broadcast %2 : vector<1x32xf32> to vector<16x32xf32>
    %22 = arith.addf %20, %21 : vector<16x32xf32>
    %c0_9 = arith.constant 0 : index
    %c0_10 = arith.constant 0 : index
    %23 = vector.load %arg5[%c0_9, %c0_10] : memref<32x64xbf16, #tpu.memory_space<vmem>>, vector<32x64xbf16>
    %24 = arith.truncf %22 : vector<16x32xf32> to vector<16x32xbf16>
    %cst_11 = arith.constant dense<0.000000e+00> : vector<16x64xf32>
    %25 = tpu.matmul %24, %23, %cst_11 {dimension_numbers = #tpu.dot_dimension_numbers<[1], [0], [0], [1], [0, 0, 1, 1], [], []>} : vector<16x32xbf16>, vector<32x64xbf16>, vector<16x64xf32> -> vector<16x64xf32>
    %c0_12 = arith.constant 0 : index
    %c0_13 = arith.constant 0 : index
    %26 = vector.load %arg6[%c0_12, %c0_13] : memref<1x64xf32, #tpu.memory_space<vmem>>, vector<1x64xf32>
    %27 = vector.broadcast %26 : vector<1x64xf32> to vector<16x64xf32>
    %28 = arith.addf %25, %27 : vector<16x64xf32>
    %cst_14 = arith.constant 0.000000e+00 : f32
    %29 = vector.broadcast %cst_14 : f32 to vector<16x64xf32>
    %30 = arith.maximumf %28, %29 : vector<16x64xf32>
    %c0_15 = arith.constant 0 : index
    %c0_16 = arith.constant 0 : index
    %31 = vector.load %arg7[%c0_15, %c0_16] : memref<16x64xf32, #tpu.memory_space<vmem>>, vector<16x64xf32>
    tpu.vector_store %arg7[%c0_15, %c0_16], %30 {strides = array<i32>} : memref<16x64xf32, #tpu.memory_space<vmem>>, vector<16x64xf32>,
    return
  }
  func.func @transform_0(%arg0: i32, %arg1: i32) -> (i32, i32) {
    %c0_i32 = arith.constant 0 : i32
    %c0_i32_0 = arith.constant 0 : i32
    return %arg0, %c0_i32 : i32, i32
  }
  func.func @transform_1(%arg0: i32, %arg1: i32) -> (i32, i32) {
    %c0_i32 = arith.constant 0 : i32
    %c0_i32_0 = arith.constant 0 : i32
    %c0_i32_1 = arith.constant 0 : i32
    return %c0_i32, %c0_i32_0 : i32, i32
  }
  func.func @transform_2(%arg0: i32, %arg1: i32) -> (i32, i32) {
    %c0_i32 = arith.constant 0 : i32
    %c0_i32_0 = arith.constant 0 : i32
    %c0_i32_1 = arith.constant 0 : i32
    return %c0_i32, %c0_i32_0 : i32, i32
  }
  func.func @transform_3(%arg0: i32, %arg1: i32) -> (i32, i32) {
    %c0_i32 = arith.constant 0 : i32
    %c0_i32_0 = arith.constant 0 : i32
    return %c0_i32, %arg1 : i32, i32
  }
  func.func @transform_4(%arg0: i32, %arg1: i32) -> (i32, i32) {
    %c0_i32 = arith.constant 0 : i32
    %c0_i32_0 = arith.constant 0 : i32
    return %c0_i32, %arg1 : i32, i32
  }
  func.func @transform_5(%arg0: i32, %arg1: i32) -> (i32, i32) {
    %c0_i32 = arith.constant 0 : i32
    return %arg0, %arg1 : i32, i32
  }
}

module attributes {stable_mosaic.version = 11 : i64} {
  func.func @_fused_linear_kernel(%arg0: i32, %arg1: i32, %arg2: memref<16x32xf32, #tpu.memory_space<vmem>>, %arg3: memref<1x32xf32, #tpu.memory_space<vmem>>, %arg4: memref<1x32xf32, #tpu.memory_space<vmem>>, %arg5: memref<32x16xbf16, #tpu.memory_space<vmem>>, %arg6: memref<16x16xf32, #tpu.memory_space<vmem>>) attributes {dimension_semantics = [#tpu.dimension_semantics<parallel>, #tpu.dimension_semantics<parallel>], iteration_bounds = array<i64: 1, 1>, scalar_prefetch = 0 : i64, scratch_operands = 0 : i64, tpu.core_type = #tpu.core_type<tc>, window_params = [{transform_indices = @transform_0, window_bounds = array<i64: 16, 32>}, {pipeline_mode = #tpu.pipeline_mode<synchronous>, transform_indices = @transform_1, window_bounds = array<i64: 1, 32>}, {pipeline_mode = #tpu.pipeline_mode<synchronous>, transform_indices = @transform_2, window_bounds = array<i64: 1, 32>}, {transform_indices = @transform_3, window_bounds = array<i64: 32, 16>}, {transform_indices = @transform_4, window_bounds = array<i64: 16, 16>}]} {
    %c0 = arith.constant 0 : index
    %c0_0 = arith.constant 0 : index
    %0 = vector.load %arg2[%c0, %c0_0] : memref<16x32xf32, #tpu.memory_space<vmem>>, vector<16x32xf32>
    %c0_1 = arith.constant 0 : index
    %c0_2 = arith.constant 0 : index
    %1 = vector.load %arg3[%c0_1, %c0_2] : memref<1x32xf32, #tpu.memory_space<vmem>>, vector<1x32xf32>
    %c0_3 = arith.constant 0 : index
    %c0_4 = arith.constant 0 : index
    %2 = vector.load %arg4[%c0_3, %c0_4] : memref<1x32xf32, #tpu.memory_space<vmem>>, vector<1x32xf32>
    %cst = arith.constant dense<0.000000e+00> : vector<16xf32>
    %3 = vector.multi_reduction <add>, %0, %cst [1] : vector<16x32xf32> to vector<16xf32>
    %4 = vector.shape_cast %3 : vector<16xf32> to vector<16x1xf32>
    %cst_5 = arith.constant 3.200000e+01 : f32
    %5 = vector.broadcast %cst_5 : f32 to vector<16x1xf32>
    %6 = arith.divf %4, %5 : vector<16x1xf32>
    %7 = vector.broadcast %6 : vector<16x1xf32> to vector<16x32xf32>
    %8 = arith.subf %0, %7 : vector<16x32xf32>
    %9 = arith.mulf %8, %8 : vector<16x32xf32>
    %cst_6 = arith.constant dense<0.000000e+00> : vector<16xf32>
    %10 = vector.multi_reduction <add>, %9, %cst_6 [1] : vector<16x32xf32> to vector<16xf32>
    %11 = vector.shape_cast %10 : vector<16xf32> to vector<16x1xf32>
    %cst_7 = arith.constant 3.200000e+01 : f32
    %12 = vector.broadcast %cst_7 : f32 to vector<16x1xf32>
    %13 = arith.divf %11, %12 : vector<16x1xf32>
    %cst_8 = arith.constant 9.99999974E-6 : f32
    %14 = vector.broadcast %cst_8 : f32 to vector<16x1xf32>
    %15 = arith.addf %13, %14 : vector<16x1xf32>
    %16 = math.rsqrt %15 : vector<16x1xf32>
    %17 = vector.broadcast %16 : vector<16x1xf32> to vector<16x32xf32>
    %18 = arith.mulf %8, %17 : vector<16x32xf32>
    %19 = vector.broadcast %1 : vector<1x32xf32> to vector<16x32xf32>
    %20 = arith.mulf %18, %19 : vector<16x32xf32>
    %21 = vector.broadcast %2 : vector<1x32xf32> to vector<16x32xf32>
    %22 = arith.addf %20, %21 : vector<16x32xf32>
    %c0_9 = arith.constant 0 : index
    %c0_10 = arith.constant 0 : index
    %23 = vector.load %arg5[%c0_9, %c0_10] : memref<32x16xbf16, #tpu.memory_space<vmem>>, vector<32x16xbf16>
    %24 = arith.truncf %22 : vector<16x32xf32> to vector<16x32xbf16>
    %cst_11 = arith.constant dense<0.000000e+00> : vector<16x16xf32>
    %25 = tpu.matmul %24, %23, %cst_11 {dimension_numbers = #tpu.dot_dimension_numbers<[1], [0], [0], [1], [0, 0, 1, 1], [], []>} : vector<16x32xbf16>, vector<32x16xbf16>, vector<16x16xf32> -> vector<16x16xf32>
    %c0_12 = arith.constant 0 : index
    %c0_13 = arith.constant 0 : index
    %26 = vector.load %arg6[%c0_12, %c0_13] : memref<16x16xf32, #tpu.memory_space<vmem>>, vector<16x16xf32>
    tpu.vector_store %arg6[%c0_12, %c0_13], %25 {strides = array<i32>} : memref<16x16xf32, #tpu.memory_space<vmem>>, vector<16x16xf32>,
    return
  }
  func.func @transform_0(%arg0: i32, %arg1: i32) -> (i32, i32) {
    %c0_i32 = arith.constant 0 : i32
    %c0_i32_0 = arith.constant 0 : i32
    return %arg0, %c0_i32 : i32, i32
  }
  func.func @transform_1(%arg0: i32, %arg1: i32) -> (i32, i32) {
    %c0_i32 = arith.constant 0 : i32
    %c0_i32_0 = arith.constant 0 : i32
    %c0_i32_1 = arith.constant 0 : i32
    return %c0_i32, %c0_i32_0 : i32, i32
  }
  func.func @transform_2(%arg0: i32, %arg1: i32) -> (i32, i32) {
    %c0_i32 = arith.constant 0 : i32
    %c0_i32_0 = arith.constant 0 : i32
    %c0_i32_1 = arith.constant 0 : i32
    return %c0_i32, %c0_i32_0 : i32, i32
  }
  func.func @transform_3(%arg0: i32, %arg1: i32) -> (i32, i32) {
    %c0_i32 = arith.constant 0 : i32
    %c0_i32_0 = arith.constant 0 : i32
    return %c0_i32, %arg1 : i32, i32
  }
  func.func @transform_4(%arg0: i32, %arg1: i32) -> (i32, i32) {
    %c0_i32 = arith.constant 0 : i32
    return %arg0, %arg1 : i32, i32
  }
}

module attributes {stable_mosaic.version = 11 : i64} {
  func.func @_fused_linear_kernel(%arg0: i32, %arg1: i32, %arg2: memref<16x64xf32, #tpu.memory_space<vmem>>, %arg3: memref<64x32xbf16, #tpu.memory_space<vmem>>, %arg4: memref<1x32xf32, #tpu.memory_space<vmem>>, %arg5: memref<16x32xf32, #tpu.memory_space<vmem>>, %arg6: memref<16x32xf32, #tpu.memory_space<vmem>>) attributes {dimension_semantics = [#tpu.dimension_semantics<parallel>, #tpu.dimension_semantics<parallel>], iteration_bounds = array<i64: 1, 1>, scalar_prefetch = 0 : i64, scratch_operands = 0 : i64, tpu.core_type = #tpu.core_type<tc>, window_params = [{transform_indices = @transform_0, window_bounds = array<i64: 16, 64>}, {transform_indices = @transform_1, window_bounds = array<i64: 64, 32>}, {transform_indices = @transform_2, window_bounds = array<i64: 1, 32>}, {transform_indices = @transform_3, window_bounds = array<i64: 16, 32>}, {transform_indices = @transform_4, window_bounds = array<i64: 16, 32>}]} {
    %c0 = arith.constant 0 : index
    %c0_0 = arith.constant 0 : index
    %0 = vector.load %arg2[%c0, %c0_0] : memref<16x64xf32, #tpu.memory_space<vmem>>, vector<16x64xf32>
    %c0_1 = arith.constant 0 : index
    %c0_2 = arith.constant 0 : index
    %1 = vector.load %arg3[%c0_1, %c0_2] : memref<64x32xbf16, #tpu.memory_space<vmem>>, vector<64x32xbf16>
    %2 = arith.truncf %0 : vector<16x64xf32> to vector<16x64xbf16>
    %cst = arith.constant dense<0.000000e+00> : vector<16x32xf32>
    %3 = tpu.matmul %2, %1, %cst {dimension_numbers = #tpu.dot_dimension_numbers<[1], [0], [0], [1], [0, 0, 1, 1], [], []>} : vector<16x64xbf16>, vector<64x32xbf16>, vector<16x32xf32> -> vector<16x32xf32>
    %c0_3 = arith.constant 0 : index
    %c0_4 = arith.constant 0 : index
    %4 = vector.load %arg4[%c0_3, %c0_4] : memref<1x32xf32, #tpu.memory_space<vmem>>, vector<1x32xf32>
    %5 = vector.broadcast %4 : vector<1x32xf32> to vector<16x32xf32>
    %6 = arith.addf %3, %5 : vector<16x32xf32>
    %c0_5 = arith.constant 0 : index
    %c0_6 = arith.constant 0 : index
    %7 = vector.load %arg5[%c0_5, %c0_6] : memref<16x32xf32, #tpu.memory_space<vmem>>, vector<16x32xf32>
    %8 = arith.addf %6, %7 : vector<16x32xf32>
    %c0_7 = arith.constant 0 : index
    %c0_8 = arith.constant 0 : index
    %9 = vector.load %arg6[%c0_7, %c0_8] : memref<16x32xf32, #tpu.memory_space<vmem>>, vector<16x32xf32>
    tpu.vector_store %arg6[%c0_7, %c0_8], %8 {strides = array<i32>} : memref<16x32xf32, #tpu.memory_space<vmem>>, vector<16x32xf32>,
    return
  }
  func.func @transform_0(%arg0: i32, %arg1: i32) -> (i32, i32) {
    %c0_i32 = arith.constant 0 : i32
    %c0_i32_0 = arith.constant 0 : i32
    return %arg0, %c0_i32 : i32, i32
  }
  func.func @transform_1(%arg0: i32, %arg1: i32) -> (i32, i32) {
    %c0_i32 = arith.constant 0 : i32
    %c0_i32_0 = arith.constant 0 : i32
    return %c0_i32, %arg1 : i32, i32
  }
  func.func @transform_2(%arg0: i32, %arg1: i32) -> (i32, i32) {
    %c0_i32 = arith.constant 0 : i32
    %c0_i32_0 = arith.constant 0 : i32
    return %c0_i32, %arg1 : i32, i32
  }
  func.func @transform_3(%arg0: i32, %arg1: i32) -> (i32, i32) {
    %c0_i32 = arith.constant 0 : i32
    return %arg0, %arg1 : i32, i32
  }
  func.func @transform_4(%arg0: i32, %arg1: i32) -> (i32, i32) {
    %c0_i32 = arith.constant 0 : i32
    return %arg0, %arg1 : i32, i32
  }
}

</mosaic_0001>

<llo_original>
// kernel: decoder_forward.22
$region0: #{decoder_forward.22}
  #allocation0 [shape = 'u32[]', space=smem, size = 0x4, offset = 0x4, fixed_abs, tag = 'smem constant byte address 0x4 - core index']
  #allocation1 [shape = 'u32[72,128]{1,0:T(1,128)}', space=vmem, size = 0x9000, scoped, tag = 'internal scratch']
  %s0 = inlined_call_operand.vmem [shape: f32[16,32], index: 0, kind: input, shape index: {}]
  %s1 = inlined_call_operand.vmem [shape: bf16[32,32], index: 1, kind: input, shape index: {}]
  %s2 = inlined_call_operand.vmem [shape: f32[1,32], index: 2, kind: input, shape index: {}]
  %s3 = inlined_call_operand.vmem [shape: f32[16,32], index: 3, kind: input, shape index: {}]
  %s4 = inlined_call_operand.vmem [shape: f32[16,32], index: 4, kind: output, shape index: {}]
  %s5 = sld [smem:[#allocation0]]
  $region26: #{decoder_forward.22} parent=0
    _
  %s7 = ssub.s32 1, %s5
  %s8 = scalar_select 0, %s7, %s5
  // Predicated region
  $region2: #{decoder_forward.22} parent=0 // pred_check
    _
  $region3: #{decoder_forward.22} parent=0 // pred_check_branch
    %10 = sbr.rel (0) target = $region5
  $region4: #{decoder_forward.22} parent=0 // pred_region
    _
  $region5: #{decoder_forward.22} parent=0 // pred_fallthru
    _
  // Predicated region
  $region6: #{decoder_forward.22} parent=0 // pred_check
    _
  $region7: #{decoder_forward.22} parent=0 // pred_check_branch
    %12 = sbr.rel (0) target = $region9
  $region8: #{decoder_forward.22} parent=0 // pred_region
    _
  $region9: #{decoder_forward.22} parent=0 // pred_fallthru
    _
  // Predicated region
  $region10: #{decoder_forward.22} parent=0 // pred_check
    _
  $region11: #{decoder_forward.22} parent=0 // pred_check_branch
    %14 = sbr.rel (0) target = $region13
  $region12: #{decoder_forward.22} parent=0 // pred_region
    _
  $region13: #{decoder_forward.22} parent=0 // pred_fallthru
    _
  // Predicated region
  $region14: #{decoder_forward.22} parent=0 // pred_check
    _
  $region15: #{decoder_forward.22} parent=0 // pred_check_branch
    %16 = sbr.rel (0) target = $region17
  $region16: #{decoder_forward.22} parent=0 // pred_region
    _
  $region17: #{decoder_forward.22} parent=0 // pred_fallthru
    _
  %v18 = vld [vmem:[%s0] sm:$0xff]
  %v19 = vld [vmem:[%s0 + $0x8] sm:$0xff]
  %v20 = vld [vmem:[%s1] sm:$0xf]
  %v21 = vld [vmem:[%s1 + $0x4] sm:$0xf]
  %v22 = vld [vmem:[%s1 + $0x8] sm:$0xf]
  %v23 = vld [vmem:[%s1 + $0xc] sm:$0xf]
  %v24 = vpack.c.bf16 %v19, %v18
  %v25 = vld [vmem:[%s2] sm:$0x1]
  %v27 = vperm.slane %v25, 0
  %v33 = vunpack.c.l.b16 %v20
  %v34 = vunpack.c.l.b16 %v21
  %v35 = vunpack.c.l.b16 %v22
  %v36 = vunpack.c.l.b16 %v23
  %v37 = vpack.c.b16 %v34, %v33
  %v38 = vpack.c.b16 %v36, %v35
  %vm41 = vcmask 261120
  %v43 = vsel %vm41, %v24, 0
  %45 = vmatpush.bf16.msra.mxu0 0
  %46 = vmatpush.bf16.msra.mxu0 0
  %47 = vmatpush.bf16.msra.mxu0 0
  %48 = vmatpush.bf16.msra.mxu0 0
  %49 = vmatpush.bf16.msra.mxu0 0
  %50 = vmatpush.bf16.msra.mxu0 0
  %51 = vmatpush.bf16.msra.mxu0 %v38
  %52 = vmatpush.bf16.msra.mxu0 %v37
  %53 = vmatmul.bf16.gmra.mxu0 %v43
  %v54 = vpop.f32.mrf.mxu0
  %v55 = vadd.f32 %v27, %v54
  %v56 = vpop.f32.mrf.mxu0
  %v57 = vadd.f32 %v27, %v56
  %58 = vdwg.mxu0
  %v59 = vld [vmem:[%s3] sm:$0xff]
  %v60 = vld [vmem:[%s3 + $0x8] sm:$0xff]
  %v61 = vadd.f32 %v55, %v59
  %v62 = vadd.f32 %v57, %v60
  %63 = vst.msk [vmem:[%s4] sm:$0xff] %vm41, %v61
  %64 = vst.msk [vmem:[%s4 + $0x8] sm:$0xff] %vm41, %v62
  // Predicated region
  $region18: #{decoder_forward.22} parent=0 // pred_check
    _
  $region19: #{decoder_forward.22} parent=0 // pred_check_branch
    %66 = sbr.rel (0) target = $region21
  $region20: #{decoder_forward.22} parent=0 // pred_region
    _
  $region21: #{decoder_forward.22} parent=0 // pred_fallthru
    _
  // Predicated region
  $region22: #{decoder_forward.22} parent=0 // pred_check
    _
  $region23: #{decoder_forward.22} parent=0 // pred_check_branch
    %68 = sbr.rel (0) target = $region25
  $region24: #{decoder_forward.22} parent=0 // pred_region
    _
  $region25: #{decoder_forward.22} parent=0 // pred_fallthru
    _

// kernel: decoder_forward.20
$region0: #{decoder_forward.20}
  #allocation0 [shape = 'u32[]', space=smem, size = 0x4, offset = 0x4, fixed_abs, tag = 'smem constant byte address 0x4 - core index']
  #allocation1 [shape = 'u32[72,128]{1,0:T(1,128)}', space=vmem, size = 0x9000, scoped, tag = 'internal scratch']
  %s0 = inlined_call_operand.vmem [shape: f32[16,32], index: 0, kind: input, shape index: {}]
  %s1 = inlined_call_operand.vmem [shape: f32[1,32], index: 1, kind: input, shape index: {}]
  %s2 = inlined_call_operand.vmem [shape: f32[1,32], index: 2, kind: input, shape index: {}]
  %s3 = inlined_call_operand.vmem [shape: bf16[32,96], index: 3, kind: input, shape index: {}]
  %s4 = inlined_call_operand.vmem [shape: f32[1,96], index: 4, kind: input, shape index: {}]
  %s5 = inlined_call_operand.vmem [shape: f32[16,96], index: 5, kind: output, shape index: {}]
  %s6 = sld [smem:[#allocation0]]
  $region30: #{decoder_forward.20} parent=0
    _
  %s8 = ssub.s32 1, %s6
  %s9 = scalar_select 0, %s8, %s6
  // Predicated region
  $region2: #{decoder_forward.20} parent=0 // pred_check
    _
  $region3: #{decoder_forward.20} parent=0 // pred_check_branch
    %11 = sbr.rel (0) target = $region5
  $region4: #{decoder_forward.20} parent=0 // pred_region
    _
  $region5: #{decoder_forward.20} parent=0 // pred_fallthru
    _
  // Predicated region
  $region6: #{decoder_forward.20} parent=0 // pred_check
    _
  $region7: #{decoder_forward.20} parent=0 // pred_check_branch
    %13 = sbr.rel (0) target = $region9
  $region8: #{decoder_forward.20} parent=0 // pred_region
    _
  $region9: #{decoder_forward.20} parent=0 // pred_fallthru
    _
  // Predicated region
  $region10: #{decoder_forward.20} parent=0 // pred_check
    _
  $region11: #{decoder_forward.20} parent=0 // pred_check_branch
    %15 = sbr.rel (0) target = $region13
  $region12: #{decoder_forward.20} parent=0 // pred_region
    _
  $region13: #{decoder_forward.20} parent=0 // pred_fallthru
    _
  // Predicated region
  $region14: #{decoder_forward.20} parent=0 // pred_check
    _
  $region15: #{decoder_forward.20} parent=0 // pred_check_branch
    %17 = sbr.rel (0) target = $region17
  $region16: #{decoder_forward.20} parent=0 // pred_region
    _
  $region17: #{decoder_forward.20} parent=0 // pred_fallthru
    _
  // Predicated region
  $region18: #{decoder_forward.20} parent=0 // pred_check
    _
  $region19: #{decoder_forward.20} parent=0 // pred_check_branch
    %19 = sbr.rel (0) target = $region21
  $region20: #{decoder_forward.20} parent=0 // pred_region
    _
  $region21: #{decoder_forward.20} parent=0 // pred_fallthru
    _
  %v21 = vld [vmem:[%s0] sm:$0xff]
  %v22 = vld [vmem:[%s0 + $0x8] sm:$0xff]
  %v23 = vld [vmem:[%s1] sm:$0x1]
  %v24 = vld [vmem:[%s2] sm:$0x1]
  %vm25 = vcmask 261120
  %v26 = vsel %vm25, %v21, 0.0
  %27 = vadd.xlane.f32.xlu0 %v26
  %v28 = vpop.xlane.xlu0 %27
  %v29 = vsel %vm25, %v22, 0.0
  %30 = vadd.xlane.f32.xlu0 %v29
  %v31 = vpop.xlane.xlu0 %30
  %v32 = vrcp.pop 32.0
  %v33 = vmul.f32 32.0, %v32
  %v34 = vsub.f32 1.0, %v33
  %v35 = vmul.f32 %v32, %v34
  %v36 = vadd.f32 %v32, %v35
  %vm37 = vweird.f32 %v32
  %v38 = vsel %vm37, %v32, %v36
  %v39 = vmul.f32 %v28, %v38
  %v40 = vmul.f32 %v31, %v38
  %v41 = vsub.f32 %v21, %v39
  %v42 = vsub.f32 %v22, %v40
  %v43 = vmul.f32 %v41, %v41
  %v44 = vmul.f32 %v42, %v42
  %v45 = vsel %vm25, %v43, 0.0
  %46 = vadd.xlane.f32.xlu0 %v45
  %v47 = vpop.xlane.xlu0 %46
  %v48 = vsel %vm25, %v44, 0.0
  %49 = vadd.xlane.f32.xlu0 %v48
  %v50 = vpop.xlane.xlu0 %49
  %v51 = vmul.f32 %v47, %v38
  %v52 = vmul.f32 %v50, %v38
  %v53 = vadd.f32 %v51, 1e-05
  %v54 = vadd.f32 %v52, 1e-05
  %v55 = vrsqrt.pop %v53
  %v56 = vmul.f32 %v55, %v53
  %v57 = vmul.f32 %v56, %v55
  %v58 = vmul.f32 0.5, %v57
  %v59 = vsub.f32 1.5, %v58
  %v60 = vmul.f32 %v55, %v59
  %vm61 = vweird.f32 %v53
  %vm62 = vweird.f32 %v55
  %vm63 = vmor %vm61, %vm62
  %v64 = vsel %vm63, %v55, %v60
  %v65 = vrsqrt.pop %v54
  %v66 = vmul.f32 %v65, %v54
  %v67 = vmul.f32 %v66, %v65
  %v68 = vmul.f32 0.5, %v67
  %v69 = vsub.f32 1.5, %v68
  %v70 = vmul.f32 %v65, %v69
  %vm71 = vweird.f32 %v54
  %vm72 = vweird.f32 %v65
  %vm73 = vmor %vm71, %vm72
  %v74 = vsel %vm73, %v65, %v70
  %v75 = vmul.f32 %v41, %v64
  %v76 = vmul.f32 %v42, %v74
  %v78 = vperm.slane %v23, 0
  %v80 = vmul.f32 %v75, %v78
  %v81 = vmul.f32 %v76, %v78
  %v83 = vperm.slane %v24, 0
  %v85 = vadd.f32 %v80, %v83
  %v86 = vadd.f32 %v81, %v83
  %v87 = vld [vmem:[%s3] sm:$0xf]
  %v88 = vld [vmem:[%s3 + $0x4] sm:$0xf]
  %v89 = vld [vmem:[%s3 + $0x8] sm:$0xf]
  %v90 = vld [vmem:[%s3 + $0xc] sm:$0xf]
  %v91 = vpack.c.bf16 %v86, %v85
  %v92 = vld [vmem:[%s4] sm:$0x1]
  %v94 = vperm.slane %v92, 0
  %v100 = vunpack.c.l.b16 %v87
  %v101 = vunpack.c.l.b16 %v88
  %v102 = vunpack.c.l.b16 %v89
  %v103 = vunpack.c.l.b16 %v90
  %v104 = vpack.c.b16 %v101, %v100
  %v105 = vpack.c.b16 %v103, %v102
  %v109 = vsel %vm25, %v91, 0
  %111 = vmatpush.bf16.msra.mxu0 0
  %112 = vmatpush.bf16.msra.mxu0 0
  %113 = vmatpush.bf16.msra.mxu0 0
  %114 = vmatpush.bf16.msra.mxu0 0
  %115 = vmatpush.bf16.msra.mxu0 0
  %116 = vmatpush.bf16.msra.mxu0 0
  %117 = vmatpush.bf16.msra.mxu0 %v105
  %118 = vmatpush.bf16.msra.mxu0 %v104
  %119 = vmatmul.bf16.gmra.mxu0 %v109
  %v120 = vpop.f32.mrf.mxu0
  %v121 = vadd.f32 %v94, %v120
  %v122 = vpop.f32.mrf.mxu0
  %v123 = vadd.f32 %v94, %v122
  %124 = vdwg.mxu0
  %vm125 = vcmask 785408
  %126 = vst.msk [vmem:[%s5] sm:$0xff] %vm125, %v121
  %127 = vst.msk [vmem:[%s5 + $0x8] sm:$0xff] %vm125, %v123
  // Predicated region
  $region22: #{decoder_forward.20} parent=0 // pred_check
    _
  $region23: #{decoder_forward.20} parent=0 // pred_check_branch
    %129 = sbr.rel (0) target = $region25
  $region24: #{decoder_forward.20} parent=0 // pred_region
    _
  $region25: #{decoder_forward.20} parent=0 // pred_fallthru
    _
  // Predicated region
  $region26: #{decoder_forward.20} parent=0 // pred_check
    _
  $region27: #{decoder_forward.20} parent=0 // pred_check_branch
    %131 = sbr.rel (0) target = $region29
  $region28: #{decoder_forward.20} parent=0 // pred_region
    _
  $region29: #{decoder_forward.20} parent=0 // pred_fallthru
    _

// kernel: decoder_forward.21
$region0: #{decoder_forward.21}
  #allocation0 [shape = 'u32[]', space=smem, size = 0x4, offset = 0x4, fixed_abs, tag = 'smem constant byte address 0x4 - core index']
  #allocation1 [shape = 'u32[72,128]{1,0:T(1,128)}', space=vmem, size = 0x9000, scoped, tag = 'internal scratch']
  %s0 = inlined_call_operand.vmem [shape: f32[8,8,8], index: 0, kind: input, shape index: {}]
  %s1 = inlined_call_operand.vmem [shape: f32[8,8,8], index: 1, kind: input, shape index: {}]
  %s2 = inlined_call_operand.vmem [shape: f32[8,8,8], index: 2, kind: input, shape index: {}]
  %s3 = inlined_call_operand.vmem [shape: f32[8,8], index: 3, kind: input, shape index: {}]
  %s4 = inlined_call_operand.vmem [shape: f32[8,8,8], index: 4, kind: output, shape index: {}]
  %s5 = sld [smem:[#allocation0]]
  $region26: #{decoder_forward.21} parent=0
    _
  %s7 = ssub.s32 1, %s5
  %s8 = scalar_select 0, %s7, %s5
  // Predicated region
  $region2: #{decoder_forward.21} parent=0 // pred_check
    _
  $region3: #{decoder_forward.21} parent=0 // pred_check_branch
    %10 = sbr.rel (0) target = $region5
  $region4: #{decoder_forward.21} parent=0 // pred_region
    _
  $region5: #{decoder_forward.21} parent=0 // pred_fallthru
    _
  // Predicated region
  $region6: #{decoder_forward.21} parent=0 // pred_check
    _
  $region7: #{decoder_forward.21} parent=0 // pred_check_branch
    %12 = sbr.rel (0) target = $region9
  $region8: #{decoder_forward.21} parent=0 // pred_region
    _
  $region9: #{decoder_forward.21} parent=0 // pred_fallthru
    _
  // Predicated region
  $region10: #{decoder_forward.21} parent=0 // pred_check
    _
  $region11: #{decoder_forward.21} parent=0 // pred_check_branch
    %14 = sbr.rel (0) target = $region13
  $region12: #{decoder_forward.21} parent=0 // pred_region
    _
  $region13: #{decoder_forward.21} parent=0 // pred_fallthru
    _
  // Predicated region
  $region14: #{decoder_forward.21} parent=0 // pred_check
    _
  $region15: #{decoder_forward.21} parent=0 // pred_check_branch
    %16 = sbr.rel (0) target = $region17
  $region16: #{decoder_forward.21} parent=0 // pred_region
    _
  $region17: #{decoder_forward.21} parent=0 // pred_fallthru
    _
  %v18 = vld [vmem:[%s0] sm:$0xff]
  %v19 = vld [vmem:[%s0 + $0x8] sm:$0xff]
  %v20 = vld [vmem:[%s0 + $0x10] sm:$0xff]
  %v21 = vld [vmem:[%s0 + $0x18] sm:$0xff]
  %v22 = vld [vmem:[%s0 + $0x20] sm:$0xff]
  %v23 = vld [vmem:[%s0 + $0x28] sm:$0xff]
  %v24 = vld [vmem:[%s0 + $0x30] sm:$0xff]
  %v25 = vld [vmem:[%s0 + $0x38] sm:$0xff]
  %v26 = vpack.c.bf16 %v18, %v18
  %v27 = vpack.c.bf16 %v19, %v19
  %v28 = vpack.c.bf16 %v20, %v20
  %v29 = vpack.c.bf16 %v21, %v21
  %v30 = vpack.c.bf16 %v22, %v22
  %v31 = vpack.c.bf16 %v23, %v23
  %v32 = vpack.c.bf16 %v24, %v24
  %v33 = vpack.c.bf16 %v25, %v25
  %v34 = vld [vmem:[%s1] sm:$0xff]
  %v35 = vld [vmem:[%s1 + $0x8] sm:$0xff]
  %v36 = vld [vmem:[%s1 + $0x10] sm:$0xff]
  %v37 = vld [vmem:[%s1 + $0x18] sm:$0xff]
  %v38 = vld [vmem:[%s1 + $0x20] sm:$0xff]
  %v39 = vld [vmem:[%s1 + $0x28] sm:$0xff]
  %v40 = vld [vmem:[%s1 + $0x30] sm:$0xff]
  %v41 = vld [vmem:[%s1 + $0x38] sm:$0xff]
  %v42 = vpack.c.bf16 %v34, %v34
  %v43 = vpack.c.bf16 %v35, %v35
  %v44 = vpack.c.bf16 %v36, %v36
  %v45 = vpack.c.bf16 %v37, %v37
  %v46 = vpack.c.bf16 %v38, %v38
  %v47 = vpack.c.bf16 %v39, %v39
  %v48 = vpack.c.bf16 %v40, %v40
  %v49 = vpack.c.bf16 %v41, %v41
  %v50 = vld [vmem:[%s2] sm:$0xff]
  %v51 = vld [vmem:[%s2 + $0x8] sm:$0xff]
  %v52 = vld [vmem:[%s2 + $0x10] sm:$0xff]
  %v53 = vld [vmem:[%s2 + $0x18] sm:$0xff]
  %v54 = vld [vmem:[%s2 + $0x20] sm:$0xff]
  %v55 = vld [vmem:[%s2 + $0x28] sm:$0xff]
  %v56 = vld [vmem:[%s2 + $0x30] sm:$0xff]
  %v57 = vld [vmem:[%s2 + $0x38] sm:$0xff]
  %v58 = vpack.c.bf16 %v50, %v50
  %v59 = vpack.c.bf16 %v51, %v51
  %v60 = vpack.c.bf16 %v52, %v52
  %v61 = vpack.c.bf16 %v53, %v53
  %v62 = vpack.c.bf16 %v54, %v54
  %v63 = vpack.c.bf16 %v55, %v55
  %v64 = vpack.c.bf16 %v56, %v56
  %v65 = vpack.c.bf16 %v57, %v57
  %v66 = vld [vmem:[%s3] sm:$0xff]
  %vm67 = vcmask 64512
  %v69 = vsel %vm67, %v26, 0
  %v72 = vsel %vm67, %v42, 0
  %74 = vmatpush.bf16.xpose.msra.mxu0 0
  %75 = vmatpush.bf16.xpose.msra.mxu0 0
  %76 = vmatpush.bf16.xpose.msra.mxu0 0
  %77 = vmatpush.bf16.xpose.msra.mxu0 0
  %78 = vmatpush.bf16.xpose.msra.mxu0 0
  %79 = vmatpush.bf16.xpose.msra.mxu0 0
  %80 = vmatpush.bf16.xpose.msra.mxu0 0
  %81 = vmatpush.bf16.xpose.msra.mxu0 %v72
  %82 = vmatmul.bf16.gmra.mxu0 %v69
  %v83 = vpop.f32.mrf.mxu0
  %v84 = vadd.f32 %v66, %v83
  %v85 = vpop.f32.mrf.mxu0
  %86 = vdwg.mxu0
  %v88 = vsel %vm67, %v27, 0
  %v91 = vsel %vm67, %v43, 0
  %93 = vmatpush.bf16.xpose.msra.mxu0 0
  %94 = vmatpush.bf16.xpose.msra.mxu0 0
  %95 = vmatpush.bf16.xpose.msra.mxu0 0
  %96 = vmatpush.bf16.xpose.msra.mxu0 0
  %97 = vmatpush.bf16.xpose.msra.mxu0 0
  %98 = vmatpush.bf16.xpose.msra.mxu0 0
  %99 = vmatpush.bf16.xpose.msra.mxu0 0
  %100 = vmatpush.bf16.xpose.msra.mxu0 %v91
  %101 = vmatmul.bf16.gmra.mxu0 %v88
  %v102 = vpop.f32.mrf.mxu0
  %v103 = vadd.f32 %v66, %v102
  %v104 = vpop.f32.mrf.mxu0
  %105 = vdwg.mxu0
  %v107 = vsel %vm67, %v28, 0
  %v110 = vsel %vm67, %v44, 0
  %112 = vmatpush.bf16.xpose.msra.mxu0 0
  %113 = vmatpush.bf16.xpose.msra.mxu0 0
  %114 = vmatpush.bf16.xpose.msra.mxu0 0
  %115 = vmatpush.bf16.xpose.msra.mxu0 0
  %116 = vmatpush.bf16.xpose.msra.mxu0 0
  %117 = vmatpush.bf16.xpose.msra.mxu0 0
  %118 = vmatpush.bf16.xpose.msra.mxu0 0
  %119 = vmatpush.bf16.xpose.msra.mxu0 %v110
  %120 = vmatmul.bf16.gmra.mxu0 %v107
  %v121 = vpop.f32.mrf.mxu0
  %v122 = vadd.f32 %v66, %v121
  %v123 = vpop.f32.mrf.mxu0
  %124 = vdwg.mxu0
  %v126 = vsel %vm67, %v29, 0
  %v129 = vsel %vm67, %v45, 0
  %131 = vmatpush.bf16.xpose.msra.mxu0 0
  %132 = vmatpush.bf16.xpose.msra.mxu0 0
  %133 = vmatpush.bf16.xpose.msra.mxu0 0
  %134 = vmatpush.bf16.xpose.msra.mxu0 0
  %135 = vmatpush.bf16.xpose.msra.mxu0 0
  %136 = vmatpush.bf16.xpose.msra.mxu0 0
  %137 = vmatpush.bf16.xpose.msra.mxu0 0
  %138 = vmatpush.bf16.xpose.msra.mxu0 %v129
  %139 = vmatmul.bf16.gmra.mxu0 %v126
  %v140 = vpop.f32.mrf.mxu0
  %v141 = vadd.f32 %v66, %v140
  %v142 = vpop.f32.mrf.mxu0
  %143 = vdwg.mxu0
  %v145 = vsel %vm67, %v30, 0
  %v148 = vsel %vm67, %v46, 0
  %150 = vmatpush.bf16.xpose.msra.mxu0 0
  %151 = vmatpush.bf16.xpose.msra.mxu0 0
  %152 = vmatpush.bf16.xpose.msra.mxu0 0
  %153 = vmatpush.bf16.xpose.msra.mxu0 0
  %154 = vmatpush.bf16.xpose.msra.mxu0 0
  %155 = vmatpush.bf16.xpose.msra.mxu0 0
  %156 = vmatpush.bf16.xpose.msra.mxu0 0
  %157 = vmatpush.bf16.xpose.msra.mxu0 %v148
  %158 = vmatmul.bf16.gmra.mxu0 %v145
  %v159 = vpop.f32.mrf.mxu0
  %v160 = vadd.f32 %v66, %v159
  %v161 = vpop.f32.mrf.mxu0
  %162 = vdwg.mxu0
  %v164 = vsel %vm67, %v31, 0
  %v167 = vsel %vm67, %v47, 0
  %169 = vmatpush.bf16.xpose.msra.mxu0 0
  %170 = vmatpush.bf16.xpose.msra.mxu0 0
  %171 = vmatpush.bf16.xpose.msra.mxu0 0
  %172 = vmatpush.bf16.xpose.msra.mxu0 0
  %173 = vmatpush.bf16.xpose.msra.mxu0 0
  %174 = vmatpush.bf16.xpose.msra.mxu0 0
  %175 = vmatpush.bf16.xpose.msra.mxu0 0
  %176 = vmatpush.bf16.xpose.msra.mxu0 %v167
  %177 = vmatmul.bf16.gmra.mxu0 %v164
  %v178 = vpop.f32.mrf.mxu0
  %v179 = vadd.f32 %v66, %v178
  %v180 = vpop.f32.mrf.mxu0
  %181 = vdwg.mxu0
  %v183 = vsel %vm67, %v32, 0
  %v186 = vsel %vm67, %v48, 0
  %188 = vmatpush.bf16.xpose.msra.mxu0 0
  %189 = vmatpush.bf16.xpose.msra.mxu0 0
  %190 = vmatpush.bf16.xpose.msra.mxu0 0
  %191 = vmatpush.bf16.xpose.msra.mxu0 0
  %192 = vmatpush.bf16.xpose.msra.mxu0 0
  %193 = vmatpush.bf16.xpose.msra.mxu0 0
  %194 = vmatpush.bf16.xpose.msra.mxu0 0
  %195 = vmatpush.bf16.xpose.msra.mxu0 %v186
  %196 = vmatmul.bf16.gmra.mxu0 %v183
  %v197 = vpop.f32.mrf.mxu0
  %v198 = vadd.f32 %v66, %v197
  %v199 = vpop.f32.mrf.mxu0
  %200 = vdwg.mxu0
  %v202 = vsel %vm67, %v33, 0
  %v205 = vsel %vm67, %v49, 0
  %207 = vmatpush.bf16.xpose.msra.mxu0 0
  %208 = vmatpush.bf16.xpose.msra.mxu0 0
  %209 = vmatpush.bf16.xpose.msra.mxu0 0
  %210 = vmatpush.bf16.xpose.msra.mxu0 0
  %211 = vmatpush.bf16.xpose.msra.mxu0 0
  %212 = vmatpush.bf16.xpose.msra.mxu0 0
  %213 = vmatpush.bf16.xpose.msra.mxu0 0
  %214 = vmatpush.bf16.xpose.msra.mxu0 %v205
  %215 = vmatmul.bf16.gmra.mxu0 %v202
  %v216 = vpop.f32.mrf.mxu0
  %v217 = vadd.f32 %v66, %v216
  %v218 = vpop.f32.mrf.mxu0
  %219 = vdwg.mxu0
  %v220 = vsel %vm67, %v84, -inf
  %221 = vmax.xlane.f32.xlu0 %v220
  %v222 = vpop.xlane.xlu0 %221
  %v223 = vsel %vm67, %v103, -inf
  %224 = vmax.xlane.f32.xlu0 %v223
  %v225 = vpop.xlane.xlu0 %224
  %v226 = vsel %vm67, %v122, -inf
  %227 = vmax.xlane.f32.xlu0 %v226
  %v228 = vpop.xlane.xlu0 %227
  %v229 = vsel %vm67, %v141, -inf
  %230 = vmax.xlane.f32.xlu0 %v229
  %v231 = vpop.xlane.xlu0 %230
  %v232 = vsel %vm67, %v160, -inf
  %233 = vmax.xlane.f32.xlu0 %v232
  %v234 = vpop.xlane.xlu0 %233
  %v235 = vsel %vm67, %v179, -inf
  %236 = vmax.xlane.f32.xlu0 %v235
  %v237 = vpop.xlane.xlu0 %236
  %v238 = vsel %vm67, %v198, -inf
  %239 = vmax.xlane.f32.xlu0 %v238
  %v240 = vpop.xlane.xlu0 %239
  %v241 = vsel %vm67, %v217, -inf
  %242 = vmax.xlane.f32.xlu0 %v241
  %v243 = vpop.xlane.xlu0 %242
  %v244 = vsub.f32 %v84, %v222
  %v245 = vsub.f32 %v103, %v225
  %v246 = vsub.f32 %v122, %v228
  %v247 = vsub.f32 %v141, %v231
  %v248 = vsub.f32 %v160, %v234
  %v249 = vsub.f32 %v179, %v237
  %v250 = vsub.f32 %v198, %v240
  %v251 = vsub.f32 %v217, %v243
  %v252 = vmul.f32 %v244, 1.442695
  %v253 = vpow.pop %v252
  %v254 = vmul.f32 %v245, 1.442695
  %v255 = vpow.pop %v254
  %v256 = vmul.f32 %v246, 1.442695
  %v257 = vpow.pop %v256
  %v258 = vmul.f32 %v247, 1.442695
  %v259 = vpow.pop %v258
  %v260 = vmul.f32 %v248, 1.442695
  %v261 = vpow.pop %v260
  %v262 = vmul.f32 %v249, 1.442695
  %v263 = vpow.pop %v262
  %v264 = vmul.f32 %v250, 1.442695
  %v265 = vpow.pop %v264
  %v266 = vmul.f32 %v251, 1.442695
  %v267 = vpow.pop %v266
  %v268 = vsel %vm67, %v253, 0.0
  %269 = vadd.xlane.f32.xlu0 %v268
  %v270 = vpop.xlane.xlu0 %269
  %v271 = vsel %vm67, %v255, 0.0
  %272 = vadd.xlane.f32.xlu0 %v271
  %v273 = vpop.xlane.xlu0 %272
  %v274 = vsel %vm67, %v257, 0.0
  %275 = vadd.xlane.f32.xlu0 %v274
  %v276 = vpop.xlane.xlu0 %275
  %v277 = vsel %vm67, %v259, 0.0
  %278 = vadd.xlane.f32.xlu0 %v277
  %v279 = vpop.xlane.xlu0 %278
  %v280 = vsel %vm67, %v261, 0.0
  %281 = vadd.xlane.f32.xlu0 %v280
  %v282 = vpop.xlane.xlu0 %281
  %v283 = vsel %vm67, %v263, 0.0
  %284 = vadd.xlane.f32.xlu0 %v283
  %v285 = vpop.xlane.xlu0 %284
  %v286 = vsel %vm67, %v265, 0.0
  %287 = vadd.xlane.f32.xlu0 %v286
  %v288 = vpop.xlane.xlu0 %287
  %v289 = vsel %vm67, %v267, 0.0
  %290 = vadd.xlane.f32.xlu0 %v289
  %v291 = vpop.xlane.xlu0 %290
  %v292 = vrcp.pop %v270
  %v293 = vrcp.pop %v273
  %v294 = vrcp.pop %v276
  %v295 = vrcp.pop %v279
  %v296 = vrcp.pop %v282
  %v297 = vrcp.pop %v285
  %v298 = vrcp.pop %v288
  %v299 = vrcp.pop %v291
  %v300 = vmul.f32 %v253, %v292
  %v301 = vmul.f32 %v255, %v293
  %v302 = vmul.f32 %v257, %v294
  %v303 = vmul.f32 %v259, %v295
  %v304 = vmul.f32 %v261, %v296
  %v305 = vmul.f32 %v263, %v297
  %v306 = vmul.f32 %v265, %v298
  %v307 = vmul.f32 %v267, %v299
  %v308 = vpack.c.bf16 %v300, %v300
  %v309 = vpack.c.bf16 %v301, %v301
  %v310 = vpack.c.bf16 %v302, %v302
  %v311 = vpack.c.bf16 %v303, %v303
  %v312 = vpack.c.bf16 %v304, %v304
  %v313 = vpack.c.bf16 %v305, %v305
  %v314 = vpack.c.bf16 %v306, %v306
  %v315 = vpack.c.bf16 %v307, %v307
  %v317 = vsel %vm67, %v308, 0
  %vm319 = vcmask 1043456
  %v321 = vsel %vm319, %v58, 0
  %323 = vmatpush.bf16.msra.mxu0 0
  %324 = vmatpush.bf16.msra.mxu0 0
  %325 = vmatpush.bf16.msra.mxu0 0
  %326 = vmatpush.bf16.msra.mxu0 0
  %327 = vmatpush.bf16.msra.mxu0 0
  %328 = vmatpush.bf16.msra.mxu0 0
  %329 = vmatpush.bf16.msra.mxu0 0
  %330 = vmatpush.bf16.msra.mxu0 %v321
  %331 = vmatmul.bf16.gmra.mxu0 %v317
  %v332 = vpop.f32.mrf.mxu0
  %v333 = vadd.f32 0.0, %v332
  %v334 = vpop.f32.mrf.mxu0
  %335 = vdwg.mxu0
  %v337 = vsel %vm67, %v309, 0
  %v340 = vsel %vm319, %v59, 0
  %342 = vmatpush.bf16.msra.mxu0 0
  %343 = vmatpush.bf16.msra.mxu0 0
  %344 = vmatpush.bf16.msra.mxu0 0
  %345 = vmatpush.bf16.msra.mxu0 0
  %346 = vmatpush.bf16.msra.mxu0 0
  %347 = vmatpush.bf16.msra.mxu0 0
  %348 = vmatpush.bf16.msra.mxu0 0
  %349 = vmatpush.bf16.msra.mxu0 %v340
  %350 = vmatmul.bf16.gmra.mxu0 %v337
  %v351 = vpop.f32.mrf.mxu0
  %v352 = vadd.f32 0.0, %v351
  %v353 = vpop.f32.mrf.mxu0
  %354 = vdwg.mxu0
  %v356 = vsel %vm67, %v310, 0
  %v359 = vsel %vm319, %v60, 0
  %361 = vmatpush.bf16.msra.mxu0 0
  %362 = vmatpush.bf16.msra.mxu0 0
  %363 = vmatpush.bf16.msra.mxu0 0
  %364 = vmatpush.bf16.msra.mxu0 0
  %365 = vmatpush.bf16.msra.mxu0 0
  %366 = vmatpush.bf16.msra.mxu0 0
  %367 = vmatpush.bf16.msra.mxu0 0
  %368 = vmatpush.bf16.msra.mxu0 %v359
  %369 = vmatmul.bf16.gmra.mxu0 %v356
  %v370 = vpop.f32.mrf.mxu0
  %v371 = vadd.f32 0.0, %v370
  %v372 = vpop.f32.mrf.mxu0
  %373 = vdwg.mxu0
  %v375 = vsel %vm67, %v311, 0
  %v378 = vsel %vm319, %v61, 0
  %380 = vmatpush.bf16.msra.mxu0 0
  %381 = vmatpush.bf16.msra.mxu0 0
  %382 = vmatpush.bf16.msra.mxu0 0
  %383 = vmatpush.bf16.msra.mxu0 0
  %384 = vmatpush.bf16.msra.mxu0 0
  %385 = vmatpush.bf16.msra.mxu0 0
  %386 = vmatpush.bf16.msra.mxu0 0
  %387 = vmatpush.bf16.msra.mxu0 %v378
  %388 = vmatmul.bf16.gmra.mxu0 %v375
  %v389 = vpop.f32.mrf.mxu0
  %v390 = vadd.f32 0.0, %v389
  %v391 = vpop.f32.mrf.mxu0
  %392 = vdwg.mxu0
  %v394 = vsel %vm67, %v312, 0
  %v397 = vsel %vm319, %v62, 0
  %399 = vmatpush.bf16.msra.mxu0 0
  %400 = vmatpush.bf16.msra.mxu0 0
  %401 = vmatpush.bf16.msra.mxu0 0
  %402 = vmatpush.bf16.msra.mxu0 0
  %403 = vmatpush.bf16.msra.mxu0 0
  %404 = vmatpush.bf16.msra.mxu0 0
  %405 = vmatpush.bf16.msra.mxu0 0
  %406 = vmatpush.bf16.msra.mxu0 %v397
  %407 = vmatmul.bf16.gmra.mxu0 %v394
  %v408 = vpop.f32.mrf.mxu0
  %v409 = vadd.f32 0.0, %v408
  %v410 = vpop.f32.mrf.mxu0
  %411 = vdwg.mxu0
  %v413 = vsel %vm67, %v313, 0
  %v416 = vsel %vm319, %v63, 0
  %418 = vmatpush.bf16.msra.mxu0 0
  %419 = vmatpush.bf16.msra.mxu0 0
  %420 = vmatpush.bf16.msra.mxu0 0
  %421 = vmatpush.bf16.msra.mxu0 0
  %422 = vmatpush.bf16.msra.mxu0 0
  %423 = vmatpush.bf16.msra.mxu0 0
  %424 = vmatpush.bf16.msra.mxu0 0
  %425 = vmatpush.bf16.msra.mxu0 %v416
  %426 = vmatmul.bf16.gmra.mxu0 %v413
  %v427 = vpop.f32.mrf.mxu0
  %v428 = vadd.f32 0.0, %v427
  %v429 = vpop.f32.mrf.mxu0
  %430 = vdwg.mxu0
  %v432 = vsel %vm67, %v314, 0
  %v435 = vsel %vm319, %v64, 0
  %437 = vmatpush.bf16.msra.mxu0 0
  %438 = vmatpush.bf16.msra.mxu0 0
  %439 = vmatpush.bf16.msra.mxu0 0
  %440 = vmatpush.bf16.msra.mxu0 0
  %441 = vmatpush.bf16.msra.mxu0 0
  %442 = vmatpush.bf16.msra.mxu0 0
  %443 = vmatpush.bf16.msra.mxu0 0
  %444 = vmatpush.bf16.msra.mxu0 %v435
  %445 = vmatmul.bf16.gmra.mxu0 %v432
  %v446 = vpop.f32.mrf.mxu0
  %v447 = vadd.f32 0.0, %v446
  %v448 = vpop.f32.mrf.mxu0
  %449 = vdwg.mxu0
  %v451 = vsel %vm67, %v315, 0
  %v454 = vsel %vm319, %v65, 0
  %456 = vmatpush.bf16.msra.mxu0 0
  %457 = vmatpush.bf16.msra.mxu0 0
  %458 = vmatpush.bf16.msra.mxu0 0
  %459 = vmatpush.bf16.msra.mxu0 0
  %460 = vmatpush.bf16.msra.mxu0 0
  %461 = vmatpush.bf16.msra.mxu0 0
  %462 = vmatpush.bf16.msra.mxu0 0
  %463 = vmatpush.bf16.msra.mxu0 %v454
  %464 = vmatmul.bf16.gmra.mxu0 %v451
  %v465 = vpop.f32.mrf.mxu0
  %v466 = vadd.f32 0.0, %v465
  %v467 = vpop.f32.mrf.mxu0
  %468 = vdwg.mxu0
  %469 = vst.msk [vmem:[%s4] sm:$0xff] %vm67, %v333
  %470 = vst.msk [vmem:[%s4 + $0x8] sm:$0xff] %vm67, %v352
  %471 = vst.msk [vmem:[%s4 + $0x10] sm:$0xff] %vm67, %v371
  %472 = vst.msk [vmem:[%s4 + $0x18] sm:$0xff] %vm67, %v390
  %473 = vst.msk [vmem:[%s4 + $0x20] sm:$0xff] %vm67, %v409
  %474 = vst.msk [vmem:[%s4 + $0x28] sm:$0xff] %vm67, %v428
  %475 = vst.msk [vmem:[%s4 + $0x30] sm:$0xff] %vm67, %v447
  %476 = vst.msk [vmem:[%s4 + $0x38] sm:$0xff] %vm67, %v466
  // Predicated region
  $region18: #{decoder_forward.21} parent=0 // pred_check
    _
  $region19: #{decoder_forward.21} parent=0 // pred_check_branch
    %478 = sbr.rel (0) target = $region21
  $region20: #{decoder_forward.21} parent=0 // pred_region
    _
  $region21: #{decoder_forward.21} parent=0 // pred_fallthru
    _
  // Predicated region
  $region22: #{decoder_forward.21} parent=0 // pred_check
    _
  $region23: #{decoder_forward.21} parent=0 // pred_check_branch
    %480 = sbr.rel (0) target = $region25
  $region24: #{decoder_forward.21} parent=0 // pred_region
    _
  $region25: #{decoder_forward.21} parent=0 // pred_fallthru
    _

// kernel: decoder_forward.23
$region0: #{decoder_forward.23}
  #allocation0 [shape = 'u32[]', space=smem, size = 0x4, offset = 0x4, fixed_abs, tag = 'smem constant byte address 0x4 - core index']
  #allocation1 [shape = 'u32[72,128]{1,0:T(1,128)}', space=vmem, size = 0x9000, scoped, tag = 'internal scratch']
  %s0 = inlined_call_operand.vmem [shape: f32[16,32], index: 0, kind: input, shape index: {}]
  %s1 = inlined_call_operand.vmem [shape: f32[1,32], index: 1, kind: input, shape index: {}]
  %s2 = inlined_call_operand.vmem [shape: f32[1,32], index: 2, kind: input, shape index: {}]
  %s3 = inlined_call_operand.vmem [shape: bf16[32,32], index: 3, kind: input, shape index: {}]
  %s4 = inlined_call_operand.vmem [shape: f32[1,32], index: 4, kind: input, shape index: {}]
  %s5 = inlined_call_operand.vmem [shape: f32[16,32], index: 5, kind: output, shape index: {}]
  %s6 = sld [smem:[#allocation0]]
  $region30: #{decoder_forward.23} parent=0
    _
  %s8 = ssub.s32 1, %s6
  %s9 = scalar_select 0, %s8, %s6
  // Predicated region
  $region2: #{decoder_forward.23} parent=0 // pred_check
    _
  $region3: #{decoder_forward.23} parent=0 // pred_check_branch
    %11 = sbr.rel (0) target = $region5
  $region4: #{decoder_forward.23} parent=0 // pred_region
    _
  $region5: #{decoder_forward.23} parent=0 // pred_fallthru
    _
  // Predicated region
  $region6: #{decoder_forward.23} parent=0 // pred_check
    _
  $region7: #{decoder_forward.23} parent=0 // pred_check_branch
    %13 = sbr.rel (0) target = $region9
  $region8: #{decoder_forward.23} parent=0 // pred_region
    _
  $region9: #{decoder_forward.23} parent=0 // pred_fallthru
    _
  // Predicated region
  $region10: #{decoder_forward.23} parent=0 // pred_check
    _
  $region11: #{decoder_forward.23} parent=0 // pred_check_branch
    %15 = sbr.rel (0) target = $region13
  $region12: #{decoder_forward.23} parent=0 // pred_region
    _
  $region13: #{decoder_forward.23} parent=0 // pred_fallthru
    _
  // Predicated region
  $region14: #{decoder_forward.23} parent=0 // pred_check
    _
  $region15: #{decoder_forward.23} parent=0 // pred_check_branch
    %17 = sbr.rel (0) target = $region17
  $region16: #{decoder_forward.23} parent=0 // pred_region
    _
  $region17: #{decoder_forward.23} parent=0 // pred_fallthru
    _
  // Predicated region
  $region18: #{decoder_forward.23} parent=0 // pred_check
    _
  $region19: #{decoder_forward.23} parent=0 // pred_check_branch
    %19 = sbr.rel (0) target = $region21
  $region20: #{decoder_forward.23} parent=0 // pred_region
    _
  $region21: #{decoder_forward.23} parent=0 // pred_fallthru
    _
  %v21 = vld [vmem:[%s0] sm:$0xff]
  %v22 = vld [vmem:[%s0 + $0x8] sm:$0xff]
  %v23 = vld [vmem:[%s1] sm:$0x1]
  %v24 = vld [vmem:[%s2] sm:$0x1]
  %vm25 = vcmask 261120
  %v26 = vsel %vm25, %v21, 0.0
  %27 = vadd.xlane.f32.xlu0 %v26
  %v28 = vpop.xlane.xlu0 %27
  %v29 = vsel %vm25, %v22, 0.0
  %30 = vadd.xlane.f32.xlu0 %v29
  %v31 = vpop.xlane.xlu0 %30
  %v32 = vrcp.pop 32.0
  %v33 = vmul.f32 32.0, %v32
  %v34 = vsub.f32 1.0, %v33
  %v35 = vmul.f32 %v32, %v34
  %v36 = vadd.f32 %v32, %v35
  %vm37 = vweird.f32 %v32
  %v38 = vsel %vm37, %v32, %v36
  %v39 = vmul.f32 %v28, %v38
  %v40 = vmul.f32 %v31, %v38
  %v41 = vsub.f32 %v21, %v39
  %v42 = vsub.f32 %v22, %v40
  %v43 = vmul.f32 %v41, %v41
  %v44 = vmul.f32 %v42, %v42
  %v45 = vsel %vm25, %v43, 0.0
  %46 = vadd.xlane.f32.xlu0 %v45
  %v47 = vpop.xlane.xlu0 %46
  %v48 = vsel %vm25, %v44, 0.0
  %49 = vadd.xlane.f32.xlu0 %v48
  %v50 = vpop.xlane.xlu0 %49
  %v51 = vmul.f32 %v47, %v38
  %v52 = vmul.f32 %v50, %v38
  %v53 = vadd.f32 %v51, 1e-05
  %v54 = vadd.f32 %v52, 1e-05
  %v55 = vrsqrt.pop %v53
  %v56 = vmul.f32 %v55, %v53
  %v57 = vmul.f32 %v56, %v55
  %v58 = vmul.f32 0.5, %v57
  %v59 = vsub.f32 1.5, %v58
  %v60 = vmul.f32 %v55, %v59
  %vm61 = vweird.f32 %v53
  %vm62 = vweird.f32 %v55
  %vm63 = vmor %vm61, %vm62
  %v64 = vsel %vm63, %v55, %v60
  %v65 = vrsqrt.pop %v54
  %v66 = vmul.f32 %v65, %v54
  %v67 = vmul.f32 %v66, %v65
  %v68 = vmul.f32 0.5, %v67
  %v69 = vsub.f32 1.5, %v68
  %v70 = vmul.f32 %v65, %v69
  %vm71 = vweird.f32 %v54
  %vm72 = vweird.f32 %v65
  %vm73 = vmor %vm71, %vm72
  %v74 = vsel %vm73, %v65, %v70
  %v75 = vmul.f32 %v41, %v64
  %v76 = vmul.f32 %v42, %v74
  %v78 = vperm.slane %v23, 0
  %v80 = vmul.f32 %v75, %v78
  %v81 = vmul.f32 %v76, %v78
  %v83 = vperm.slane %v24, 0
  %v85 = vadd.f32 %v80, %v83
  %v86 = vadd.f32 %v81, %v83
  %v87 = vld [vmem:[%s3] sm:$0xf]
  %v88 = vld [vmem:[%s3 + $0x4] sm:$0xf]
  %v89 = vld [vmem:[%s3 + $0x8] sm:$0xf]
  %v90 = vld [vmem:[%s3 + $0xc] sm:$0xf]
  %v91 = vpack.c.bf16 %v86, %v85
  %v92 = vld [vmem:[%s4] sm:$0x1]
  %v94 = vperm.slane %v92, 0
  %v100 = vunpack.c.l.b16 %v87
  %v101 = vunpack.c.l.b16 %v88
  %v102 = vunpack.c.l.b16 %v89
  %v103 = vunpack.c.l.b16 %v90
  %v104 = vpack.c.b16 %v101, %v100
  %v105 = vpack.c.b16 %v103, %v102
  %v109 = vsel %vm25, %v91, 0
  %111 = vmatpush.bf16.msra.mxu0 0
  %112 = vmatpush.bf16.msra.mxu0 0
  %113 = vmatpush.bf16.msra.mxu0 0
  %114 = vmatpush.bf16.msra.mxu0 0
  %115 = vmatpush.bf16.msra.mxu0 0
  %116 = vmatpush.bf16.msra.mxu0 0
  %117 = vmatpush.bf16.msra.mxu0 %v105
  %118 = vmatpush.bf16.msra.mxu0 %v104
  %119 = vmatmul.bf16.gmra.mxu0 %v109
  %v120 = vpop.f32.mrf.mxu0
  %v121 = vadd.f32 %v94, %v120
  %v122 = vpop.f32.mrf.mxu0
  %v123 = vadd.f32 %v94, %v122
  %124 = vdwg.mxu0
  %125 = vst.msk [vmem:[%s5] sm:$0xff] %vm25, %v121
  %126 = vst.msk [vmem:[%s5 + $0x8] sm:$0xff] %vm25, %v123
  // Predicated region
  $region22: #{decoder_forward.23} parent=0 // pred_check
    _
  $region23: #{decoder_forward.23} parent=0 // pred_check_branch
    %128 = sbr.rel (0) target = $region25
  $region24: #{decoder_forward.23} parent=0 // pred_region
    _
  $region25: #{decoder_forward.23} parent=0 // pred_fallthru
    _
  // Predicated region
  $region26: #{decoder_forward.23} parent=0 // pred_check
    _
  $region27: #{decoder_forward.23} parent=0 // pred_check_branch
    %130 = sbr.rel (0) target = $region29
  $region28: #{decoder_forward.23} parent=0 // pred_region
    _
  $region29: #{decoder_forward.23} parent=0 // pred_fallthru
    _

// kernel: decoder_forward.19
$region0: #{decoder_forward.19}
  #allocation0 [shape = 'u32[]', space=smem, size = 0x4, offset = 0x4, fixed_abs, tag = 'smem constant byte address 0x4 - core index']
  #allocation1 [shape = 'u32[72,128]{1,0:T(1,128)}', space=vmem, size = 0x9000, scoped, tag = 'internal scratch']
  %s0 = inlined_call_operand.vmem [shape: f32[16,32], index: 0, kind: input, shape index: {}]
  %s1 = inlined_call_operand.vmem [shape: bf16[32,64], index: 1, kind: input, shape index: {}]
  %s2 = inlined_call_operand.vmem [shape: f32[1,64], index: 2, kind: input, shape index: {}]
  %s3 = inlined_call_operand.vmem [shape: f32[16,64], index: 3, kind: output, shape index: {}]
  %s4 = sld [smem:[#allocation0]]
  $region22: #{decoder_forward.19} parent=0
    _
  %s6 = ssub.s32 1, %s4
  %s7 = scalar_select 0, %s6, %s4
  // Predicated region
  $region2: #{decoder_forward.19} parent=0 // pred_check
    _
  $region3: #{decoder_forward.19} parent=0 // pred_check_branch
    %9 = sbr.rel (0) target = $region5
  $region4: #{decoder_forward.19} parent=0 // pred_region
    _
  $region5: #{decoder_forward.19} parent=0 // pred_fallthru
    _
  // Predicated region
  $region6: #{decoder_forward.19} parent=0 // pred_check
    _
  $region7: #{decoder_forward.19} parent=0 // pred_check_branch
    %11 = sbr.rel (0) target = $region9
  $region8: #{decoder_forward.19} parent=0 // pred_region
    _
  $region9: #{decoder_forward.19} parent=0 // pred_fallthru
    _
  // Predicated region
  $region10: #{decoder_forward.19} parent=0 // pred_check
    _
  $region11: #{decoder_forward.19} parent=0 // pred_check_branch
    %13 = sbr.rel (0) target = $region13
  $region12: #{decoder_forward.19} parent=0 // pred_region
    _
  $region13: #{decoder_forward.19} parent=0 // pred_fallthru
    _
  %v15 = vld [vmem:[%s0] sm:$0xff]
  %v16 = vld [vmem:[%s0 + $0x8] sm:$0xff]
  %v17 = vld [vmem:[%s1] sm:$0xf]
  %v18 = vld [vmem:[%s1 + $0x4] sm:$0xf]
  %v19 = vld [vmem:[%s1 + $0x8] sm:$0xf]
  %v20 = vld [vmem:[%s1 + $0xc] sm:$0xf]
  %v21 = vpack.c.bf16 %v16, %v15
  %v22 = vld [vmem:[%s2] sm:$0x1]
  %v24 = vperm.slane %v22, 0
  %v30 = vunpack.c.l.b16 %v17
  %v31 = vunpack.c.l.b16 %v18
  %v32 = vunpack.c.l.b16 %v19
  %v33 = vunpack.c.l.b16 %v20
  %v34 = vpack.c.b16 %v31, %v30
  %v35 = vpack.c.b16 %v33, %v32
  %vm38 = vcmask 261120
  %v40 = vsel %vm38, %v21, 0
  %42 = vmatpush.bf16.msra.mxu0 0
  %43 = vmatpush.bf16.msra.mxu0 0
  %44 = vmatpush.bf16.msra.mxu0 0
  %45 = vmatpush.bf16.msra.mxu0 0
  %46 = vmatpush.bf16.msra.mxu0 0
  %47 = vmatpush.bf16.msra.mxu0 0
  %48 = vmatpush.bf16.msra.mxu0 %v35
  %49 = vmatpush.bf16.msra.mxu0 %v34
  %50 = vmatmul.bf16.gmra.mxu0 %v40
  %v51 = vpop.f32.mrf.mxu0
  %v52 = vadd.f32 %v24, %v51
  %v53 = vpop.f32.mrf.mxu0
  %v54 = vadd.f32 %v24, %v53
  %55 = vdwg.mxu0
  %vm56 = vcmask 523264
  %57 = vst.msk [vmem:[%s3] sm:$0xff] %vm56, %v52
  %58 = vst.msk [vmem:[%s3 + $0x8] sm:$0xff] %vm56, %v54
  // Predicated region
  $region14: #{decoder_forward.19} parent=0 // pred_check
    _
  $region15: #{decoder_forward.19} parent=0 // pred_check_branch
    %60 = sbr.rel (0) target = $region17
  $region16: #{decoder_forward.19} parent=0 // pred_region
    _
  $region17: #{decoder_forward.19} parent=0 // pred_fallthru
    _
  // Predicated region
  $region18: #{decoder_forward.19} parent=0 // pred_check
    _
  $region19: #{decoder_forward.19} parent=0 // pred_check_branch
    %62 = sbr.rel (0) target = $region21
  $region20: #{decoder_forward.19} parent=0 // pred_region
    _
  $region21: #{decoder_forward.19} parent=0 // pred_fallthru
    _

// kernel: decoder_forward.26
$region0: #{decoder_forward.26}
  #allocation0 [shape = 'u32[]', space=smem, size = 0x4, offset = 0x4, fixed_abs, tag = 'smem constant byte address 0x4 - core index']
  #allocation1 [shape = 'u32[72,128]{1,0:T(1,128)}', space=vmem, size = 0x9000, scoped, tag = 'internal scratch']
  %s0 = inlined_call_operand.vmem [shape: f32[16,32], index: 0, kind: input, shape index: {}]
  %s1 = inlined_call_operand.vmem [shape: f32[1,32], index: 1, kind: input, shape index: {}]
  %s2 = inlined_call_operand.vmem [shape: f32[1,32], index: 2, kind: input, shape index: {}]
  %s3 = inlined_call_operand.vmem [shape: bf16[32,64], index: 3, kind: input, shape index: {}]
  %s4 = inlined_call_operand.vmem [shape: f32[1,64], index: 4, kind: input, shape index: {}]
  %s5 = inlined_call_operand.vmem [shape: f32[16,64], index: 5, kind: output, shape index: {}]
  %s6 = sld [smem:[#allocation0]]
  $region30: #{decoder_forward.26} parent=0
    _
  %s8 = ssub.s32 1, %s6
  %s9 = scalar_select 0, %s8, %s6
  // Predicated region
  $region2: #{decoder_forward.26} parent=0 // pred_check
    _
  $region3: #{decoder_forward.26} parent=0 // pred_check_branch
    %11 = sbr.rel (0) target = $region5
  $region4: #{decoder_forward.26} parent=0 // pred_region
    _
  $region5: #{decoder_forward.26} parent=0 // pred_fallthru
    _
  // Predicated region
  $region6: #{decoder_forward.26} parent=0 // pred_check
    _
  $region7: #{decoder_forward.26} parent=0 // pred_check_branch
    %13 = sbr.rel (0) target = $region9
  $region8: #{decoder_forward.26} parent=0 // pred_region
    _
  $region9: #{decoder_forward.26} parent=0 // pred_fallthru
    _
  // Predicated region
  $region10: #{decoder_forward.26} parent=0 // pred_check
    _
  $region11: #{decoder_forward.26} parent=0 // pred_check_branch
    %15 = sbr.rel (0) target = $region13
  $region12: #{decoder_forward.26} parent=0 // pred_region
    _
  $region13: #{decoder_forward.26} parent=0 // pred_fallthru
    _
  // Predicated region
  $region14: #{decoder_forward.26} parent=0 // pred_check
    _
  $region15: #{decoder_forward.26} parent=0 // pred_check_branch
    %17 = sbr.rel (0) target = $region17
  $region16: #{decoder_forward.26} parent=0 // pred_region
    _
  $region17: #{decoder_forward.26} parent=0 // pred_fallthru
    _
  // Predicated region
  $region18: #{decoder_forward.26} parent=0 // pred_check
    _
  $region19: #{decoder_forward.26} parent=0 // pred_check_branch
    %19 = sbr.rel (0) target = $region21
  $region20: #{decoder_forward.26} parent=0 // pred_region
    _
  $region21: #{decoder_forward.26} parent=0 // pred_fallthru
    _
  %v21 = vld [vmem:[%s0] sm:$0xff]
  %v22 = vld [vmem:[%s0 + $0x8] sm:$0xff]
  %v23 = vld [vmem:[%s1] sm:$0x1]
  %v24 = vld [vmem:[%s2] sm:$0x1]
  %vm25 = vcmask 261120
  %v26 = vsel %vm25, %v21, 0.0
  %27 = vadd.xlane.f32.xlu0 %v26
  %v28 = vpop.xlane.xlu0 %27
  %v29 = vsel %vm25, %v22, 0.0
  %30 = vadd.xlane.f32.xlu0 %v29
  %v31 = vpop.xlane.xlu0 %30
  %v32 = vrcp.pop 32.0
  %v33 = vmul.f32 32.0, %v32
  %v34 = vsub.f32 1.0, %v33
  %v35 = vmul.f32 %v32, %v34
  %v36 = vadd.f32 %v32, %v35
  %vm37 = vweird.f32 %v32
  %v38 = vsel %vm37, %v32, %v36
  %v39 = vmul.f32 %v28, %v38
  %v40 = vmul.f32 %v31, %v38
  %v41 = vsub.f32 %v21, %v39
  %v42 = vsub.f32 %v22, %v40
  %v43 = vmul.f32 %v41, %v41
  %v44 = vmul.f32 %v42, %v42
  %v45 = vsel %vm25, %v43, 0.0
  %46 = vadd.xlane.f32.xlu0 %v45
  %v47 = vpop.xlane.xlu0 %46
  %v48 = vsel %vm25, %v44, 0.0
  %49 = vadd.xlane.f32.xlu0 %v48
  %v50 = vpop.xlane.xlu0 %49
  %v51 = vmul.f32 %v47, %v38
  %v52 = vmul.f32 %v50, %v38
  %v53 = vadd.f32 %v51, 1e-05
  %v54 = vadd.f32 %v52, 1e-05
  %v55 = vrsqrt.pop %v53
  %v56 = vmul.f32 %v55, %v53
  %v57 = vmul.f32 %v56, %v55
  %v58 = vmul.f32 0.5, %v57
  %v59 = vsub.f32 1.5, %v58
  %v60 = vmul.f32 %v55, %v59
  %vm61 = vweird.f32 %v53
  %vm62 = vweird.f32 %v55
  %vm63 = vmor %vm61, %vm62
  %v64 = vsel %vm63, %v55, %v60
  %v65 = vrsqrt.pop %v54
  %v66 = vmul.f32 %v65, %v54
  %v67 = vmul.f32 %v66, %v65
  %v68 = vmul.f32 0.5, %v67
  %v69 = vsub.f32 1.5, %v68
  %v70 = vmul.f32 %v65, %v69
  %vm71 = vweird.f32 %v54
  %vm72 = vweird.f32 %v65
  %vm73 = vmor %vm71, %vm72
  %v74 = vsel %vm73, %v65, %v70
  %v75 = vmul.f32 %v41, %v64
  %v76 = vmul.f32 %v42, %v74
  %v78 = vperm.slane %v23, 0
  %v80 = vmul.f32 %v75, %v78
  %v81 = vmul.f32 %v76, %v78
  %v83 = vperm.slane %v24, 0
  %v85 = vadd.f32 %v80, %v83
  %v86 = vadd.f32 %v81, %v83
  %v87 = vld [vmem:[%s3] sm:$0xf]
  %v88 = vld [vmem:[%s3 + $0x4] sm:$0xf]
  %v89 = vld [vmem:[%s3 + $0x8] sm:$0xf]
  %v90 = vld [vmem:[%s3 + $0xc] sm:$0xf]
  %v91 = vpack.c.bf16 %v86, %v85
  %v92 = vld [vmem:[%s4] sm:$0x1]
  %v94 = vperm.slane %v92, 0
  %v100 = vunpack.c.l.b16 %v87
  %v101 = vunpack.c.l.b16 %v88
  %v102 = vunpack.c.l.b16 %v89
  %v103 = vunpack.c.l.b16 %v90
  %v104 = vpack.c.b16 %v101, %v100
  %v105 = vpack.c.b16 %v103, %v102
  %v109 = vsel %vm25, %v91, 0
  %111 = vmatpush.bf16.msra.mxu0 0
  %112 = vmatpush.bf16.msra.mxu0 0
  %113 = vmatpush.bf16.msra.mxu0 0
  %114 = vmatpush.bf16.msra.mxu0 0
  %115 = vmatpush.bf16.msra.mxu0 0
  %116 = vmatpush.bf16.msra.mxu0 0
  %117 = vmatpush.bf16.msra.mxu0 %v105
  %118 = vmatpush.bf16.msra.mxu0 %v104
  %119 = vmatmul.bf16.gmra.mxu0 %v109
  %v120 = vpop.f32.mrf.mxu0
  %v121 = vadd.f32 %v94, %v120
  %v122 = vpop.f32.mrf.mxu0
  %v123 = vadd.f32 %v94, %v122
  %124 = vdwg.mxu0
  %v125 = vmax.f32 %v121, 0.0
  %v126 = vmax.f32 %v123, 0.0
  %vm127 = vcmask 523264
  %128 = vst.msk [vmem:[%s5] sm:$0xff] %vm127, %v125
  %129 = vst.msk [vmem:[%s5 + $0x8] sm:$0xff] %vm127, %v126
  // Predicated region
  $region22: #{decoder_forward.26} parent=0 // pred_check
    _
  $region23: #{decoder_forward.26} parent=0 // pred_check_branch
    %131 = sbr.rel (0) target = $region25
  $region24: #{decoder_forward.26} parent=0 // pred_region
    _
  $region25: #{decoder_forward.26} parent=0 // pred_fallthru
    _
  // Predicated region
  $region26: #{decoder_forward.26} parent=0 // pred_check
    _
  $region27: #{decoder_forward.26} parent=0 // pred_check_branch
    %133 = sbr.rel (0) target = $region29
  $region28: #{decoder_forward.26} parent=0 // pred_region
    _
  $region29: #{decoder_forward.26} parent=0 // pred_fallthru
    _

// kernel: decoder_forward.37
$region0: #{decoder_forward.37}
  #allocation0 [shape = 'u32[]', space=smem, size = 0x4, offset = 0x4, fixed_abs, tag = 'smem constant byte address 0x4 - core index']
  #allocation1 [shape = 'u32[72,128]{1,0:T(1,128)}', space=vmem, size = 0x9000, scoped, tag = 'internal scratch']
  %s0 = inlined_call_operand.vmem [shape: f32[16,32], index: 0, kind: input, shape index: {}]
  %s1 = inlined_call_operand.vmem [shape: f32[1,32], index: 1, kind: input, shape index: {}]
  %s2 = inlined_call_operand.vmem [shape: f32[1,32], index: 2, kind: input, shape index: {}]
  %s3 = inlined_call_operand.vmem [shape: bf16[32,16], index: 3, kind: input, shape index: {}]
  %s4 = inlined_call_operand.hbm [shape: f32[16,16], index: 4, kind: output, shape index: {}]
  %s5 = sld [smem:[#allocation0]]
  $region26: #{decoder_forward.37} parent=0
    _
  %s7 = ssub.s32 1, %s5
  %s8 = scalar_select 0, %s7, %s5
  $region1: #{decoder_forward.37} parent=0
    #allocation2 [shape = 'u8[8192]{0}', space=vmem, size = 0x2000, scoped, tag = 'output window, operand 0, single buffered']
    #allocation3 [shape = 's32[1]{0}', space=sflag, size = 0x4, scoped, tag = 'scoped memory for decoder_forward.37']
    %9 = vsyncpa [#allocation3], 0
    // Predicated region
    $region2: #{decoder_forward.37} parent=1 // pred_check
      _
    $region3: #{decoder_forward.37} parent=1 // pred_check_branch
      %11 = sbr.rel (0) target = $region5
    $region4: #{decoder_forward.37} parent=1 // pred_region
      _
    $region5: #{decoder_forward.37} parent=1 // pred_fallthru
      _
    // Predicated region
    $region6: #{decoder_forward.37} parent=1 // pred_check
      _
    $region7: #{decoder_forward.37} parent=1 // pred_check_branch
      %13 = sbr.rel (0) target = $region9
    $region8: #{decoder_forward.37} parent=1 // pred_region
      _
    $region9: #{decoder_forward.37} parent=1 // pred_fallthru
      _
    // Predicated region
    $region10: #{decoder_forward.37} parent=1 // pred_check
      _
    $region11: #{decoder_forward.37} parent=1 // pred_check_branch
      %15 = sbr.rel (0) target = $region13
    $region12: #{decoder_forward.37} parent=1 // pred_region
      _
    $region13: #{decoder_forward.37} parent=1 // pred_fallthru
      _
    // Predicated region
    $region14: #{decoder_forward.37} parent=1 // pred_check
      _
    $region15: #{decoder_forward.37} parent=1 // pred_check_branch
      %17 = sbr.rel (0) target = $region17
    $region16: #{decoder_forward.37} parent=1 // pred_region
      _
    $region17: #{decoder_forward.37} parent=1 // pred_fallthru
      _
    %v19 = vld [vmem:[%s0] sm:$0xff]
    %v20 = vld [vmem:[%s0 + $0x8] sm:$0xff]
    %v21 = vld [vmem:[%s1] sm:$0x1]
    %v22 = vld [vmem:[%s2] sm:$0x1]
    %vm23 = vcmask 261120
    %v24 = vsel %vm23, %v19, 0.0
    %25 = vadd.xlane.f32.xlu0 %v24
    %v26 = vpop.xlane.xlu0 %25
    %v27 = vsel %vm23, %v20, 0.0
    %28 = vadd.xlane.f32.xlu0 %v27
    %v29 = vpop.xlane.xlu0 %28
    %v30 = vrcp.pop 32.0
    %v31 = vmul.f32 32.0, %v30
    %v32 = vsub.f32 1.0, %v31
    %v33 = vmul.f32 %v30, %v32
    %v34 = vadd.f32 %v30, %v33
    %vm35 = vweird.f32 %v30
    %v36 = vsel %vm35, %v30, %v34
    %v37 = vmul.f32 %v26, %v36
    %v38 = vmul.f32 %v29, %v36
    %v39 = vsub.f32 %v19, %v37
    %v40 = vsub.f32 %v20, %v38
    %v41 = vmul.f32 %v39, %v39
    %v42 = vmul.f32 %v40, %v40
    %v43 = vsel %vm23, %v41, 0.0
    %44 = vadd.xlane.f32.xlu0 %v43
    %v45 = vpop.xlane.xlu0 %44
    %v46 = vsel %vm23, %v42, 0.0
    %47 = vadd.xlane.f32.xlu0 %v46
    %v48 = vpop.xlane.xlu0 %47
    %v49 = vmul.f32 %v45, %v36
    %v50 = vmul.f32 %v48, %v36
    %v51 = vadd.f32 %v49, 1e-05
    %v52 = vadd.f32 %v50, 1e-05
    %v53 = vrsqrt.pop %v51
    %v54 = vmul.f32 %v53, %v51
    %v55 = vmul.f32 %v54, %v53
    %v56 = vmul.f32 0.5, %v55
    %v57 = vsub.f32 1.5, %v56
    %v58 = vmul.f32 %v53, %v57
    %vm59 = vweird.f32 %v51
    %vm60 = vweird.f32 %v53
    %vm61 = vmor %vm59, %vm60
    %v62 = vsel %vm61, %v53, %v58
    %v63 = vrsqrt.pop %v52
    %v64 = vmul.f32 %v63, %v52
    %v65 = vmul.f32 %v64, %v63
    %v66 = vmul.f32 0.5, %v65
    %v67 = vsub.f32 1.5, %v66
    %v68 = vmul.f32 %v63, %v67
    %vm69 = vweird.f32 %v52
    %vm70 = vweird.f32 %v63
    %vm71 = vmor %vm69, %vm70
    %v72 = vsel %vm71, %v63, %v68
    %v73 = vmul.f32 %v39, %v62
    %v74 = vmul.f32 %v40, %v72
    %v76 = vperm.slane %v21, 0
    %v78 = vmul.f32 %v73, %v76
    %v79 = vmul.f32 %v74, %v76
    %v81 = vperm.slane %v22, 0
    %v83 = vadd.f32 %v78, %v81
    %v84 = vadd.f32 %v79, %v81
    %v85 = vld [vmem:[%s3] sm:$0xf]
    %v86 = vld [vmem:[%s3 + $0x4] sm:$0xf]
    %v87 = vld [vmem:[%s3 + $0x8] sm:$0xf]
    %v88 = vld [vmem:[%s3 + $0xc] sm:$0xf]
    %v89 = vpack.c.bf16 %v84, %v83
    %v94 = vunpack.c.l.b16 %v85
    %v95 = vunpack.c.l.b16 %v86
    %v96 = vunpack.c.l.b16 %v87
    %v97 = vunpack.c.l.b16 %v88
    %v98 = vpack.c.b16 %v95, %v94
    %v99 = vpack.c.b16 %v97, %v96
    %v103 = vsel %vm23, %v89, 0
    %105 = vmatpush.bf16.msra.mxu0 0
    %106 = vmatpush.bf16.msra.mxu0 0
    %107 = vmatpush.bf16.msra.mxu0 0
    %108 = vmatpush.bf16.msra.mxu0 0
    %109 = vmatpush.bf16.msra.mxu0 0
    %110 = vmatpush.bf16.msra.mxu0 0
    %111 = vmatpush.bf16.msra.mxu0 %v99
    %112 = vmatpush.bf16.msra.mxu0 %v98
    %113 = vmatmul.bf16.gmra.mxu0 %v103
    %v114 = vpop.f32.mrf.mxu0
    %v115 = vadd.f32 0.0, %v114
    %v116 = vpop.f32.mrf.mxu0
    %v117 = vadd.f32 0.0, %v116
    %118 = vdwg.mxu0
    %vm119 = vcmask 130048
    %120 = vst.msk [vmem:[#allocation2] sm:$0xff] %vm119, %v115
    %121 = vst.msk [vmem:[#allocation2 + $0x8] sm:$0xff] %vm119, %v117
    // Predicated region
    $region18: #{decoder_forward.37} parent=1 // pred_check
      _
    $region19: #{decoder_forward.37} parent=1 // pred_check_branch
      %123 = sbr.rel (0) target = $region21
    $region20: #{decoder_forward.37} parent=1 // pred_region
      %125 = vsyncadd [#allocation3], 0
      %s126 = sshll.u32 [#allocation2], 4
      %s127 = int_to_ptr.vmem [resolvable:$true] %s126
      %s128 = sshll.u32 %s4, 4
      %s129 = int_to_ptr.hbm [resolvable:$true] %s128
      %134 = dma.vmem_to_hbm [thread:$0]  %s127, 256, %s129, [#allocation3], 128, 128, 8
    $region21: #{decoder_forward.37} parent=1 // pred_fallthru
      _
    // Predicated region
    $region22: #{decoder_forward.37} parent=1 // pred_check
      _
    $region23: #{decoder_forward.37} parent=1 // pred_check_branch
      %136 = sbr.rel (0) target = $region25
    $region24: #{decoder_forward.37} parent=1 // pred_region
      %138 = dma.done [#allocation3], 256
    $region25: #{decoder_forward.37} parent=1 // pred_fallthru
      _
    %139 = vsyncpa [#allocation3], 1

// kernel: decoder_forward.27
$region0: #{decoder_forward.27}
  #allocation0 [shape = 'u32[]', space=smem, size = 0x4, offset = 0x4, fixed_abs, tag = 'smem constant byte address 0x4 - core index']
  #allocation1 [shape = 'u32[72,128]{1,0:T(1,128)}', space=vmem, size = 0x9000, scoped, tag = 'internal scratch']
  %s0 = inlined_call_operand.vmem [shape: f32[16,64], index: 0, kind: input, shape index: {}]
  %s1 = inlined_call_operand.vmem [shape: bf16[64,32], index: 1, kind: input, shape index: {}]
  %s2 = inlined_call_operand.vmem [shape: f32[1,32], index: 2, kind: input, shape index: {}]
  %s3 = inlined_call_operand.vmem [shape: f32[16,32], index: 3, kind: input, shape index: {}]
  %s4 = inlined_call_operand.vmem [shape: f32[16,32], index: 4, kind: output, shape index: {}]
  %s5 = sld [smem:[#allocation0]]
  $region26: #{decoder_forward.27} parent=0
    _
  %s7 = ssub.s32 1, %s5
  %s8 = scalar_select 0, %s7, %s5
  // Predicated region
  $region2: #{decoder_forward.27} parent=0 // pred_check
    _
  $region3: #{decoder_forward.27} parent=0 // pred_check_branch
    %10 = sbr.rel (0) target = $region5
  $region4: #{decoder_forward.27} parent=0 // pred_region
    _
  $region5: #{decoder_forward.27} parent=0 // pred_fallthru
    _
  // Predicated region
  $region6: #{decoder_forward.27} parent=0 // pred_check
    _
  $region7: #{decoder_forward.27} parent=0 // pred_check_branch
    %12 = sbr.rel (0) target = $region9
  $region8: #{decoder_forward.27} parent=0 // pred_region
    _
  $region9: #{decoder_forward.27} parent=0 // pred_fallthru
    _
  // Predicated region
  $region10: #{decoder_forward.27} parent=0 // pred_check
    _
  $region11: #{decoder_forward.27} parent=0 // pred_check_branch
    %14 = sbr.rel (0) target = $region13
  $region12: #{decoder_forward.27} parent=0 // pred_region
    _
  $region13: #{decoder_forward.27} parent=0 // pred_fallthru
    _
  // Predicated region
  $region14: #{decoder_forward.27} parent=0 // pred_check
    _
  $region15: #{decoder_forward.27} parent=0 // pred_check_branch
    %16 = sbr.rel (0) target = $region17
  $region16: #{decoder_forward.27} parent=0 // pred_region
    _
  $region17: #{decoder_forward.27} parent=0 // pred_fallthru
    _
  %v18 = vld [vmem:[%s0] sm:$0xff]
  %v19 = vld [vmem:[%s0 + $0x8] sm:$0xff]
  %v20 = vld [vmem:[%s1] sm:$0xf]
  %v21 = vld [vmem:[%s1 + $0x4] sm:$0xf]
  %v22 = vld [vmem:[%s1 + $0x8] sm:$0xf]
  %v23 = vld [vmem:[%s1 + $0xc] sm:$0xf]
  %v24 = vld [vmem:[%s1 + $0x10] sm:$0xf]
  %v25 = vld [vmem:[%s1 + $0x14] sm:$0xf]
  %v26 = vld [vmem:[%s1 + $0x18] sm:$0xf]
  %v27 = vld [vmem:[%s1 + $0x1c] sm:$0xf]
  %v28 = vpack.c.bf16 %v19, %v18
  %v29 = vld [vmem:[%s2] sm:$0x1]
  %v31 = vperm.slane %v29, 0
  %v41 = vunpack.c.l.b16 %v20
  %v42 = vunpack.c.l.b16 %v21
  %v43 = vunpack.c.l.b16 %v22
  %v44 = vunpack.c.l.b16 %v23
  %v45 = vunpack.c.l.b16 %v24
  %v46 = vunpack.c.l.b16 %v25
  %v47 = vunpack.c.l.b16 %v26
  %v48 = vunpack.c.l.b16 %v27
  %v49 = vpack.c.b16 %v42, %v41
  %v50 = vpack.c.b16 %v44, %v43
  %v51 = vpack.c.b16 %v46, %v45
  %v52 = vpack.c.b16 %v48, %v47
  %vm57 = vcmask 523264
  %v59 = vsel %vm57, %v28, 0
  %61 = vmatpush.bf16.msra.mxu0 0
  %62 = vmatpush.bf16.msra.mxu0 0
  %63 = vmatpush.bf16.msra.mxu0 0
  %64 = vmatpush.bf16.msra.mxu0 0
  %65 = vmatpush.bf16.msra.mxu0 %v52
  %66 = vmatpush.bf16.msra.mxu0 %v51
  %67 = vmatpush.bf16.msra.mxu0 %v50
  %68 = vmatpush.bf16.msra.mxu0 %v49
  %69 = vmatmul.bf16.gmra.mxu0 %v59
  %v70 = vpop.f32.mrf.mxu0
  %v71 = vadd.f32 %v31, %v70
  %v72 = vpop.f32.mrf.mxu0
  %v73 = vadd.f32 %v31, %v72
  %74 = vdwg.mxu0
  %v75 = vld [vmem:[%s3] sm:$0xff]
  %v76 = vld [vmem:[%s3 + $0x8] sm:$0xff]
  %v77 = vadd.f32 %v71, %v75
  %v78 = vadd.f32 %v73, %v76
  %vm79 = vcmask 261120
  %80 = vst.msk [vmem:[%s4] sm:$0xff] %vm79, %v77
  %81 = vst.msk [vmem:[%s4 + $0x8] sm:$0xff] %vm79, %v78
  // Predicated region
  $region18: #{decoder_forward.27} parent=0 // pred_check
    _
  $region19: #{decoder_forward.27} parent=0 // pred_check_branch
    %83 = sbr.rel (0) target = $region21
  $region20: #{decoder_forward.27} parent=0 // pred_region
    _
  $region21: #{decoder_forward.27} parent=0 // pred_fallthru
    _
  // Predicated region
  $region22: #{decoder_forward.27} parent=0 // pred_check
    _
  $region23: #{decoder_forward.27} parent=0 // pred_check_branch
    %85 = sbr.rel (0) target = $region25
  $region24: #{decoder_forward.27} parent=0 // pred_region
    _
  $region25: #{decoder_forward.27} parent=0 // pred_fallthru
    _

// kernel: decoder_forward.24
$region0: #{decoder_forward.24}
  #allocation0 [shape = 'u32[]', space=smem, size = 0x4, offset = 0x4, fixed_abs, tag = 'smem constant byte address 0x4 - core index']
  #allocation1 [shape = 'u32[72,128]{1,0:T(1,128)}', space=vmem, size = 0x9000, scoped, tag = 'internal scratch']
  %s0 = inlined_call_operand.vmem [shape: f32[8,8,8], index: 0, kind: input, shape index: {}]
  %s1 = inlined_call_operand.vmem [shape: f32[8,8,8], index: 1, kind: input, shape index: {}]
  %s2 = inlined_call_operand.vmem [shape: f32[8,8,8], index: 2, kind: input, shape index: {}]
  %s3 = inlined_call_operand.vmem [shape: f32[8,8,8], index: 3, kind: output, shape index: {}]
  %s4 = sld [smem:[#allocation0]]
  $region22: #{decoder_forward.24} parent=0
    _
  %s6 = ssub.s32 1, %s4
  %s7 = scalar_select 0, %s6, %s4
  // Predicated region
  $region2: #{decoder_forward.24} parent=0 // pred_check
    _
  $region3: #{decoder_forward.24} parent=0 // pred_check_branch
    %9 = sbr.rel (0) target = $region5
  $region4: #{decoder_forward.24} parent=0 // pred_region
    _
  $region5: #{decoder_forward.24} parent=0 // pred_fallthru
    _
  // Predicated region
  $region6: #{decoder_forward.24} parent=0 // pred_check
    _
  $region7: #{decoder_forward.24} parent=0 // pred_check_branch
    %11 = sbr.rel (0) target = $region9
  $region8: #{decoder_forward.24} parent=0 // pred_region
    _
  $region9: #{decoder_forward.24} parent=0 // pred_fallthru
    _
  // Predicated region
  $region10: #{decoder_forward.24} parent=0 // pred_check
    _
  $region11: #{decoder_forward.24} parent=0 // pred_check_branch
    %13 = sbr.rel (0) target = $region13
  $region12: #{decoder_forward.24} parent=0 // pred_region
    _
  $region13: #{decoder_forward.24} parent=0 // pred_fallthru
    _
  %v15 = vld [vmem:[%s0] sm:$0xff]
  %v16 = vld [vmem:[%s0 + $0x8] sm:$0xff]
  %v17 = vld [vmem:[%s0 + $0x10] sm:$0xff]
  %v18 = vld [vmem:[%s0 + $0x18] sm:$0xff]
  %v19 = vld [vmem:[%s0 + $0x20] sm:$0xff]
  %v20 = vld [vmem:[%s0 + $0x28] sm:$0xff]
  %v21 = vld [vmem:[%s0 + $0x30] sm:$0xff]
  %v22 = vld [vmem:[%s0 + $0x38] sm:$0xff]
  %v23 = vpack.c.bf16 %v15, %v15
  %v24 = vpack.c.bf16 %v16, %v16
  %v25 = vpack.c.bf16 %v17, %v17
  %v26 = vpack.c.bf16 %v18, %v18
  %v27 = vpack.c.bf16 %v19, %v19
  %v28 = vpack.c.bf16 %v20, %v20
  %v29 = vpack.c.bf16 %v21, %v21
  %v30 = vpack.c.bf16 %v22, %v22
  %v31 = vld [vmem:[%s1] sm:$0xff]
  %v32 = vld [vmem:[%s1 + $0x8] sm:$0xff]
  %v33 = vld [vmem:[%s1 + $0x10] sm:$0xff]
  %v34 = vld [vmem:[%s1 + $0x18] sm:$0xff]
  %v35 = vld [vmem:[%s1 + $0x20] sm:$0xff]
  %v36 = vld [vmem:[%s1 + $0x28] sm:$0xff]
  %v37 = vld [vmem:[%s1 + $0x30] sm:$0xff]
  %v38 = vld [vmem:[%s1 + $0x38] sm:$0xff]
  %v39 = vpack.c.bf16 %v31, %v31
  %v40 = vpack.c.bf16 %v32, %v32
  %v41 = vpack.c.bf16 %v33, %v33
  %v42 = vpack.c.bf16 %v34, %v34
  %v43 = vpack.c.bf16 %v35, %v35
  %v44 = vpack.c.bf16 %v36, %v36
  %v45 = vpack.c.bf16 %v37, %v37
  %v46 = vpack.c.bf16 %v38, %v38
  %v47 = vld [vmem:[%s2] sm:$0xff]
  %v48 = vld [vmem:[%s2 + $0x8] sm:$0xff]
  %v49 = vld [vmem:[%s2 + $0x10] sm:$0xff]
  %v50 = vld [vmem:[%s2 + $0x18] sm:$0xff]
  %v51 = vld [vmem:[%s2 + $0x20] sm:$0xff]
  %v52 = vld [vmem:[%s2 + $0x28] sm:$0xff]
  %v53 = vld [vmem:[%s2 + $0x30] sm:$0xff]
  %v54 = vld [vmem:[%s2 + $0x38] sm:$0xff]
  %v55 = vpack.c.bf16 %v47, %v47
  %v56 = vpack.c.bf16 %v48, %v48
  %v57 = vpack.c.bf16 %v49, %v49
  %v58 = vpack.c.bf16 %v50, %v50
  %v59 = vpack.c.bf16 %v51, %v51
  %v60 = vpack.c.bf16 %v52, %v52
  %v61 = vpack.c.bf16 %v53, %v53
  %v62 = vpack.c.bf16 %v54, %v54
  %vm63 = vcmask 64512
  %v65 = vsel %vm63, %v23, 0
  %v68 = vsel %vm63, %v39, 0
  %70 = vmatpush.bf16.xpose.msra.mxu0 0
  %71 = vmatpush.bf16.xpose.msra.mxu0 0
  %72 = vmatpush.bf16.xpose.msra.mxu0 0
  %73 = vmatpush.bf16.xpose.msra.mxu0 0
  %74 = vmatpush.bf16.xpose.msra.mxu0 0
  %75 = vmatpush.bf16.xpose.msra.mxu0 0
  %76 = vmatpush.bf16.xpose.msra.mxu0 0
  %77 = vmatpush.bf16.xpose.msra.mxu0 %v68
  %78 = vmatmul.bf16.gmra.mxu0 %v65
  %v79 = vpop.f32.mrf.mxu0
  %v80 = vadd.f32 0.0, %v79
  %v81 = vpop.f32.mrf.mxu0
  %82 = vdwg.mxu0
  %v84 = vsel %vm63, %v24, 0
  %v87 = vsel %vm63, %v40, 0
  %89 = vmatpush.bf16.xpose.msra.mxu0 0
  %90 = vmatpush.bf16.xpose.msra.mxu0 0
  %91 = vmatpush.bf16.xpose.msra.mxu0 0
  %92 = vmatpush.bf16.xpose.msra.mxu0 0
  %93 = vmatpush.bf16.xpose.msra.mxu0 0
  %94 = vmatpush.bf16.xpose.msra.mxu0 0
  %95 = vmatpush.bf16.xpose.msra.mxu0 0
  %96 = vmatpush.bf16.xpose.msra.mxu0 %v87
  %97 = vmatmul.bf16.gmra.mxu0 %v84
  %v98 = vpop.f32.mrf.mxu0
  %v99 = vadd.f32 0.0, %v98
  %v100 = vpop.f32.mrf.mxu0
  %101 = vdwg.mxu0
  %v103 = vsel %vm63, %v25, 0
  %v106 = vsel %vm63, %v41, 0
  %108 = vmatpush.bf16.xpose.msra.mxu0 0
  %109 = vmatpush.bf16.xpose.msra.mxu0 0
  %110 = vmatpush.bf16.xpose.msra.mxu0 0
  %111 = vmatpush.bf16.xpose.msra.mxu0 0
  %112 = vmatpush.bf16.xpose.msra.mxu0 0
  %113 = vmatpush.bf16.xpose.msra.mxu0 0
  %114 = vmatpush.bf16.xpose.msra.mxu0 0
  %115 = vmatpush.bf16.xpose.msra.mxu0 %v106
  %116 = vmatmul.bf16.gmra.mxu0 %v103
  %v117 = vpop.f32.mrf.mxu0
  %v118 = vadd.f32 0.0, %v117
  %v119 = vpop.f32.mrf.mxu0
  %120 = vdwg.mxu0
  %v122 = vsel %vm63, %v26, 0
  %v125 = vsel %vm63, %v42, 0
  %127 = vmatpush.bf16.xpose.msra.mxu0 0
  %128 = vmatpush.bf16.xpose.msra.mxu0 0
  %129 = vmatpush.bf16.xpose.msra.mxu0 0
  %130 = vmatpush.bf16.xpose.msra.mxu0 0
  %131 = vmatpush.bf16.xpose.msra.mxu0 0
  %132 = vmatpush.bf16.xpose.msra.mxu0 0
  %133 = vmatpush.bf16.xpose.msra.mxu0 0
  %134 = vmatpush.bf16.xpose.msra.mxu0 %v125
  %135 = vmatmul.bf16.gmra.mxu0 %v122
  %v136 = vpop.f32.mrf.mxu0
  %v137 = vadd.f32 0.0, %v136
  %v138 = vpop.f32.mrf.mxu0
  %139 = vdwg.mxu0
  %v141 = vsel %vm63, %v27, 0
  %v144 = vsel %vm63, %v43, 0
  %146 = vmatpush.bf16.xpose.msra.mxu0 0
  %147 = vmatpush.bf16.xpose.msra.mxu0 0
  %148 = vmatpush.bf16.xpose.msra.mxu0 0
  %149 = vmatpush.bf16.xpose.msra.mxu0 0
  %150 = vmatpush.bf16.xpose.msra.mxu0 0
  %151 = vmatpush.bf16.xpose.msra.mxu0 0
  %152 = vmatpush.bf16.xpose.msra.mxu0 0
  %153 = vmatpush.bf16.xpose.msra.mxu0 %v144
  %154 = vmatmul.bf16.gmra.mxu0 %v141
  %v155 = vpop.f32.mrf.mxu0
  %v156 = vadd.f32 0.0, %v155
  %v157 = vpop.f32.mrf.mxu0
  %158 = vdwg.mxu0
  %v160 = vsel %vm63, %v28, 0
  %v163 = vsel %vm63, %v44, 0
  %165 = vmatpush.bf16.xpose.msra.mxu0 0
  %166 = vmatpush.bf16.xpose.msra.mxu0 0
  %167 = vmatpush.bf16.xpose.msra.mxu0 0
  %168 = vmatpush.bf16.xpose.msra.mxu0 0
  %169 = vmatpush.bf16.xpose.msra.mxu0 0
  %170 = vmatpush.bf16.xpose.msra.mxu0 0
  %171 = vmatpush.bf16.xpose.msra.mxu0 0
  %172 = vmatpush.bf16.xpose.msra.mxu0 %v163
  %173 = vmatmul.bf16.gmra.mxu0 %v160
  %v174 = vpop.f32.mrf.mxu0
  %v175 = vadd.f32 0.0, %v174
  %v176 = vpop.f32.mrf.mxu0
  %177 = vdwg.mxu0
  %v179 = vsel %vm63, %v29, 0
  %v182 = vsel %vm63, %v45, 0
  %184 = vmatpush.bf16.xpose.msra.mxu0 0
  %185 = vmatpush.bf16.xpose.msra.mxu0 0
  %186 = vmatpush.bf16.xpose.msra.mxu0 0
  %187 = vmatpush.bf16.xpose.msra.mxu0 0
  %188 = vmatpush.bf16.xpose.msra.mxu0 0
  %189 = vmatpush.bf16.xpose.msra.mxu0 0
  %190 = vmatpush.bf16.xpose.msra.mxu0 0
  %191 = vmatpush.bf16.xpose.msra.mxu0 %v182
  %192 = vmatmul.bf16.gmra.mxu0 %v179
  %v193 = vpop.f32.mrf.mxu0
  %v194 = vadd.f32 0.0, %v193
  %v195 = vpop.f32.mrf.mxu0
  %196 = vdwg.mxu0
  %v198 = vsel %vm63, %v30, 0
  %v201 = vsel %vm63, %v46, 0
  %203 = vmatpush.bf16.xpose.msra.mxu0 0
  %204 = vmatpush.bf16.xpose.msra.mxu0 0
  %205 = vmatpush.bf16.xpose.msra.mxu0 0
  %206 = vmatpush.bf16.xpose.msra.mxu0 0
  %207 = vmatpush.bf16.xpose.msra.mxu0 0
  %208 = vmatpush.bf16.xpose.msra.mxu0 0
  %209 = vmatpush.bf16.xpose.msra.mxu0 0
  %210 = vmatpush.bf16.xpose.msra.mxu0 %v201
  %211 = vmatmul.bf16.gmra.mxu0 %v198
  %v212 = vpop.f32.mrf.mxu0
  %v213 = vadd.f32 0.0, %v212
  %v214 = vpop.f32.mrf.mxu0
  %215 = vdwg.mxu0
  %v216 = vsel %vm63, %v80, -inf
  %217 = vmax.xlane.f32.xlu0 %v216
  %v218 = vpop.xlane.xlu0 %217
  %v219 = vsel %vm63, %v99, -inf
  %220 = vmax.xlane.f32.xlu0 %v219
  %v221 = vpop.xlane.xlu0 %220
  %v222 = vsel %vm63, %v118, -inf
  %223 = vmax.xlane.f32.xlu0 %v222
  %v224 = vpop.xlane.xlu0 %223
  %v225 = vsel %vm63, %v137, -inf
  %226 = vmax.xlane.f32.xlu0 %v225
  %v227 = vpop.xlane.xlu0 %226
  %v228 = vsel %vm63, %v156, -inf
  %229 = vmax.xlane.f32.xlu0 %v228
  %v230 = vpop.xlane.xlu0 %229
  %v231 = vsel %vm63, %v175, -inf
  %232 = vmax.xlane.f32.xlu0 %v231
  %v233 = vpop.xlane.xlu0 %232
  %v234 = vsel %vm63, %v194, -inf
  %235 = vmax.xlane.f32.xlu0 %v234
  %v236 = vpop.xlane.xlu0 %235
  %v237 = vsel %vm63, %v213, -inf
  %238 = vmax.xlane.f32.xlu0 %v237
  %v239 = vpop.xlane.xlu0 %238
  %v240 = vsub.f32 %v80, %v218
  %v241 = vsub.f32 %v99, %v221
  %v242 = vsub.f32 %v118, %v224
  %v243 = vsub.f32 %v137, %v227
  %v244 = vsub.f32 %v156, %v230
  %v245 = vsub.f32 %v175, %v233
  %v246 = vsub.f32 %v194, %v236
  %v247 = vsub.f32 %v213, %v239
  %v248 = vmul.f32 %v240, 1.442695
  %v249 = vpow.pop %v248
  %v250 = vmul.f32 %v241, 1.442695
  %v251 = vpow.pop %v250
  %v252 = vmul.f32 %v242, 1.442695
  %v253 = vpow.pop %v252
  %v254 = vmul.f32 %v243, 1.442695
  %v255 = vpow.pop %v254
  %v256 = vmul.f32 %v244, 1.442695
  %v257 = vpow.pop %v256
  %v258 = vmul.f32 %v245, 1.442695
  %v259 = vpow.pop %v258
  %v260 = vmul.f32 %v246, 1.442695
  %v261 = vpow.pop %v260
  %v262 = vmul.f32 %v247, 1.442695
  %v263 = vpow.pop %v262
  %v264 = vsel %vm63, %v249, 0.0
  %265 = vadd.xlane.f32.xlu0 %v264
  %v266 = vpop.xlane.xlu0 %265
  %v267 = vsel %vm63, %v251, 0.0
  %268 = vadd.xlane.f32.xlu0 %v267
  %v269 = vpop.xlane.xlu0 %268
  %v270 = vsel %vm63, %v253, 0.0
  %271 = vadd.xlane.f32.xlu0 %v270
  %v272 = vpop.xlane.xlu0 %271
  %v273 = vsel %vm63, %v255, 0.0
  %274 = vadd.xlane.f32.xlu0 %v273
  %v275 = vpop.xlane.xlu0 %274
  %v276 = vsel %vm63, %v257, 0.0
  %277 = vadd.xlane.f32.xlu0 %v276
  %v278 = vpop.xlane.xlu0 %277
  %v279 = vsel %vm63, %v259, 0.0
  %280 = vadd.xlane.f32.xlu0 %v279
  %v281 = vpop.xlane.xlu0 %280
  %v282 = vsel %vm63, %v261, 0.0
  %283 = vadd.xlane.f32.xlu0 %v282
  %v284 = vpop.xlane.xlu0 %283
  %v285 = vsel %vm63, %v263, 0.0
  %286 = vadd.xlane.f32.xlu0 %v285
  %v287 = vpop.xlane.xlu0 %286
  %v288 = vrcp.pop %v266
  %v289 = vrcp.pop %v269
  %v290 = vrcp.pop %v272
  %v291 = vrcp.pop %v275
  %v292 = vrcp.pop %v278
  %v293 = vrcp.pop %v281
  %v294 = vrcp.pop %v284
  %v295 = vrcp.pop %v287
  %v296 = vmul.f32 %v249, %v288
  %v297 = vmul.f32 %v251, %v289
  %v298 = vmul.f32 %v253, %v290
  %v299 = vmul.f32 %v255, %v291
  %v300 = vmul.f32 %v257, %v292
  %v301 = vmul.f32 %v259, %v293
  %v302 = vmul.f32 %v261, %v294
  %v303 = vmul.f32 %v263, %v295
  %v304 = vpack.c.bf16 %v296, %v296
  %v305 = vpack.c.bf16 %v297, %v297
  %v306 = vpack.c.bf16 %v298, %v298
  %v307 = vpack.c.bf16 %v299, %v299
  %v308 = vpack.c.bf16 %v300, %v300
  %v309 = vpack.c.bf16 %v301, %v301
  %v310 = vpack.c.bf16 %v302, %v302
  %v311 = vpack.c.bf16 %v303, %v303
  %v313 = vsel %vm63, %v304, 0
  %vm315 = vcmask 1043456
  %v317 = vsel %vm315, %v55, 0
  %319 = vmatpush.bf16.msra.mxu0 0
  %320 = vmatpush.bf16.msra.mxu0 0
  %321 = vmatpush.bf16.msra.mxu0 0
  %322 = vmatpush.bf16.msra.mxu0 0
  %323 = vmatpush.bf16.msra.mxu0 0
  %324 = vmatpush.bf16.msra.mxu0 0
  %325 = vmatpush.bf16.msra.mxu0 0
  %326 = vmatpush.bf16.msra.mxu0 %v317
  %327 = vmatmul.bf16.gmra.mxu0 %v313
  %v328 = vpop.f32.mrf.mxu0
  %v329 = vadd.f32 0.0, %v328
  %v330 = vpop.f32.mrf.mxu0
  %331 = vdwg.mxu0
  %v333 = vsel %vm63, %v305, 0
  %v336 = vsel %vm315, %v56, 0
  %338 = vmatpush.bf16.msra.mxu0 0
  %339 = vmatpush.bf16.msra.mxu0 0
  %340 = vmatpush.bf16.msra.mxu0 0
  %341 = vmatpush.bf16.msra.mxu0 0
  %342 = vmatpush.bf16.msra.mxu0 0
  %343 = vmatpush.bf16.msra.mxu0 0
  %344 = vmatpush.bf16.msra.mxu0 0
  %345 = vmatpush.bf16.msra.mxu0 %v336
  %346 = vmatmul.bf16.gmra.mxu0 %v333
  %v347 = vpop.f32.mrf.mxu0
  %v348 = vadd.f32 0.0, %v347
  %v349 = vpop.f32.mrf.mxu0
  %350 = vdwg.mxu0
  %v352 = vsel %vm63, %v306, 0
  %v355 = vsel %vm315, %v57, 0
  %357 = vmatpush.bf16.msra.mxu0 0
  %358 = vmatpush.bf16.msra.mxu0 0
  %359 = vmatpush.bf16.msra.mxu0 0
  %360 = vmatpush.bf16.msra.mxu0 0
  %361 = vmatpush.bf16.msra.mxu0 0
  %362 = vmatpush.bf16.msra.mxu0 0
  %363 = vmatpush.bf16.msra.mxu0 0
  %364 = vmatpush.bf16.msra.mxu0 %v355
  %365 = vmatmul.bf16.gmra.mxu0 %v352
  %v366 = vpop.f32.mrf.mxu0
  %v367 = vadd.f32 0.0, %v366
  %v368 = vpop.f32.mrf.mxu0
  %369 = vdwg.mxu0
  %v371 = vsel %vm63, %v307, 0
  %v374 = vsel %vm315, %v58, 0
  %376 = vmatpush.bf16.msra.mxu0 0
  %377 = vmatpush.bf16.msra.mxu0 0
  %378 = vmatpush.bf16.msra.mxu0 0
  %379 = vmatpush.bf16.msra.mxu0 0
  %380 = vmatpush.bf16.msra.mxu0 0
  %381 = vmatpush.bf16.msra.mxu0 0
  %382 = vmatpush.bf16.msra.mxu0 0
  %383 = vmatpush.bf16.msra.mxu0 %v374
  %384 = vmatmul.bf16.gmra.mxu0 %v371
  %v385 = vpop.f32.mrf.mxu0
  %v386 = vadd.f32 0.0, %v385
  %v387 = vpop.f32.mrf.mxu0
  %388 = vdwg.mxu0
  %v390 = vsel %vm63, %v308, 0
  %v393 = vsel %vm315, %v59, 0
  %395 = vmatpush.bf16.msra.mxu0 0
  %396 = vmatpush.bf16.msra.mxu0 0
  %397 = vmatpush.bf16.msra.mxu0 0
  %398 = vmatpush.bf16.msra.mxu0 0
  %399 = vmatpush.bf16.msra.mxu0 0
  %400 = vmatpush.bf16.msra.mxu0 0
  %401 = vmatpush.bf16.msra.mxu0 0
  %402 = vmatpush.bf16.msra.mxu0 %v393
  %403 = vmatmul.bf16.gmra.mxu0 %v390
  %v404 = vpop.f32.mrf.mxu0
  %v405 = vadd.f32 0.0, %v404
  %v406 = vpop.f32.mrf.mxu0
  %407 = vdwg.mxu0
  %v409 = vsel %vm63, %v309, 0
  %v412 = vsel %vm315, %v60, 0
  %414 = vmatpush.bf16.msra.mxu0 0
  %415 = vmatpush.bf16.msra.mxu0 0
  %416 = vmatpush.bf16.msra.mxu0 0
  %417 = vmatpush.bf16.msra.mxu0 0
  %418 = vmatpush.bf16.msra.mxu0 0
  %419 = vmatpush.bf16.msra.mxu0 0
  %420 = vmatpush.bf16.msra.mxu0 0
  %421 = vmatpush.bf16.msra.mxu0 %v412
  %422 = vmatmul.bf16.gmra.mxu0 %v409
  %v423 = vpop.f32.mrf.mxu0
  %v424 = vadd.f32 0.0, %v423
  %v425 = vpop.f32.mrf.mxu0
  %426 = vdwg.mxu0
  %v428 = vsel %vm63, %v310, 0
  %v431 = vsel %vm315, %v61, 0
  %433 = vmatpush.bf16.msra.mxu0 0
  %434 = vmatpush.bf16.msra.mxu0 0
  %435 = vmatpush.bf16.msra.mxu0 0
  %436 = vmatpush.bf16.msra.mxu0 0
  %437 = vmatpush.bf16.msra.mxu0 0
  %438 = vmatpush.bf16.msra.mxu0 0
  %439 = vmatpush.bf16.msra.mxu0 0
  %440 = vmatpush.bf16.msra.mxu0 %v431
  %441 = vmatmul.bf16.gmra.mxu0 %v428
  %v442 = vpop.f32.mrf.mxu0
  %v443 = vadd.f32 0.0, %v442
  %v444 = vpop.f32.mrf.mxu0
  %445 = vdwg.mxu0
  %v447 = vsel %vm63, %v311, 0
  %v450 = vsel %vm315, %v62, 0
  %452 = vmatpush.bf16.msra.mxu0 0
  %453 = vmatpush.bf16.msra.mxu0 0
  %454 = vmatpush.bf16.msra.mxu0 0
  %455 = vmatpush.bf16.msra.mxu0 0
  %456 = vmatpush.bf16.msra.mxu0 0
  %457 = vmatpush.bf16.msra.mxu0 0
  %458 = vmatpush.bf16.msra.mxu0 0
  %459 = vmatpush.bf16.msra.mxu0 %v450
  %460 = vmatmul.bf16.gmra.mxu0 %v447
  %v461 = vpop.f32.mrf.mxu0
  %v462 = vadd.f32 0.0, %v461
  %v463 = vpop.f32.mrf.mxu0
  %464 = vdwg.mxu0
  %465 = vst.msk [vmem:[%s3] sm:$0xff] %vm63, %v329
  %466 = vst.msk [vmem:[%s3 + $0x8] sm:$0xff] %vm63, %v348
  %467 = vst.msk [vmem:[%s3 + $0x10] sm:$0xff] %vm63, %v367
  %468 = vst.msk [vmem:[%s3 + $0x18] sm:$0xff] %vm63, %v386
  %469 = vst.msk [vmem:[%s3 + $0x20] sm:$0xff] %vm63, %v405
  %470 = vst.msk [vmem:[%s3 + $0x28] sm:$0xff] %vm63, %v424
  %471 = vst.msk [vmem:[%s3 + $0x30] sm:$0xff] %vm63, %v443
  %472 = vst.msk [vmem:[%s3 + $0x38] sm:$0xff] %vm63, %v462
  // Predicated region
  $region14: #{decoder_forward.24} parent=0 // pred_check
    _
  $region15: #{decoder_forward.24} parent=0 // pred_check_branch
    %474 = sbr.rel (0) target = $region17
  $region16: #{decoder_forward.24} parent=0 // pred_region
    _
  $region17: #{decoder_forward.24} parent=0 // pred_fallthru
    _
  // Predicated region
  $region18: #{decoder_forward.24} parent=0 // pred_check
    _
  $region19: #{decoder_forward.24} parent=0 // pred_check_branch
    %476 = sbr.rel (0) target = $region21
  $region20: #{decoder_forward.24} parent=0 // pred_region
    _
  $region21: #{decoder_forward.24} parent=0 // pred_fallthru
    _

</llo_original>
